<compile_context>
chip_gen: v7x
topology: tpu7x:2x2x1
jax: 0.10.0
libtpu: 0.0.40
codegen_flags: <defaults>
</compile_context>

<pallas_src>
import jax
import jax.numpy as jnp
from jax.experimental import pallas as pl
from jax.experimental.pallas import tpu as pltpu


def _softplus(x):
    # matches F.softplus (beta=1); numerically stable via logaddexp
    return jnp.logaddexp(x, 0.0)


def mingru_scan_kernel(x_ref, is_init_ref, h0_ref, w_hg_ref, w_out_ref,
                       out_ref, hn_ref, a_scr, b_scr):
    # x_ref:       (T, Bblk, Din)   time-major block of Bblk sequences
    # is_init_ref: (Bblk, T)        reset flags, batch-major (lane = time)
    # h0_ref:      (Bblk, H)
    # w_hg_ref:    (Din, 2H) fused [hidden | gate] weights (pre-transposed)
    # w_out_ref:   (H, Dout)
    # out_ref:     (T, Bblk, Dout), hn_ref: (Bblk, H)
    # a_scr/b_scr: (T*Bblk, H) VMEM scratch (prefix logA+log_h0 / prefix logB)
    T, Bblk, Din = x_ref.shape
    H = h0_ref.shape[-1]

    # One fused MXU pass: (T*Bblk, Din) @ (Din, 2H)
    x = x_ref[...].reshape(T * Bblk, Din)           # row = t*Bblk + b (time-major)
    hg = jnp.dot(x, w_hg_ref[...], preferred_element_type=jnp.float32)
    hidden = hg[:, :H]
    gate = hg[:, H:]

    log_coeffs = -_softplus(gate)                   # (T*Bblk, H)
    log_z = -_softplus(-gate)
    # log_g(x) = where(x >= 0, log(relu(x) + 0.5), -softplus(-x))
    log_tilde_h = jnp.where(hidden >= 0.0,
                            jnp.log(jnp.maximum(hidden, 0.0) + 0.5),
                            -_softplus(-hidden))
    log_values = log_z + log_tilde_h                # (T*Bblk, H)

    log_h0 = jnp.log(h0_ref[...])                   # (Bblk, H); h0==0 -> -inf (ok)
    b_seq = is_init_ref[...]                        # (Bblk, T)

    # Serial left-fold over time; each step is full-width (Bblk, H) vreg work.
    logA = jnp.zeros((Bblk, H), jnp.float32)
    logB = jnp.full((Bblk, H), -jnp.inf, jnp.float32)
    for t in range(T):                              # T is a small static constant
        rows = slice(t * Bblk, (t + 1) * Bblk)
        logA2 = log_coeffs[rows, :]
        logB2 = log_values[rows, :]
        reset = b_seq[:, t:t + 1] > 0.5             # (Bblk, 1) -> lane broadcast
        logA_n = jnp.where(reset, logA, logA2)
        logB_n = jnp.where(reset, logB2, jnp.logaddexp(logA2 + logB, logB2))
        logA, logB = logA_n, logB_n
        a_scr[rows, :] = logA + log_h0
        b_scr[rows, :] = logB

    # Epilogue: full-tile EUP work + one lane-dense output matmul.
    # h_t = exp(logaddexp(logA_t + log_h0, logB_t)) == exp(logA_t+log_h0) + exp(logB_t)
    h = jnp.exp(a_scr[...]) + jnp.exp(b_scr[...])   # (T*Bblk, H)
    out = jnp.dot(h, w_out_ref[...], preferred_element_type=jnp.float32)
    out_ref[...] = out.reshape(T, Bblk, -1)
    hn_ref[...] = h[(T - 1) * Bblk:, :]             # last timestep of each sequence


def mingru_forward(x, is_init, h0, w_hg, w_out, *, block_b=8):
    """x: (B,T,Din) f32, is_init: (B,T,1), h0: (B,1,H),
    w_hg: (Din,2H) fused [hidden|gate], w_out: (H,Dout).
    Returns (out (B,T,Dout), h_n (B,1,H))."""
    B, T, Din = x.shape
    H = h0.shape[-1]
    Dout = w_out.shape[-1]

    # Pad batch to a multiple of block_b (padded rows are discarded on return).
    Bpad = ((B + block_b - 1) // block_b) * block_b
    if Bpad != B:
        pad = Bpad - B
        x = jnp.pad(x, ((0, pad), (0, 0), (0, 0)))
        is_init = jnp.pad(is_init, ((0, pad), (0, 0), (0, 0)))
        h0 = jnp.pad(h0, ((0, pad), (0, 0), (0, 0)))

    x_t = jnp.transpose(x, (1, 0, 2))                 # (T, Bpad, Din) time-major
    is_init_bt = is_init.astype(jnp.float32)[..., 0]  # (Bpad, T)
    h0_2d = h0[:, 0, :]                               # (Bpad, H)

    out_t, h_n = pl.pallas_call(
        mingru_scan_kernel,
        out_shape=(jax.ShapeDtypeStruct((T, Bpad, Dout), jnp.float32),
                   jax.ShapeDtypeStruct((Bpad, H), jnp.float32)),
        grid=(Bpad // block_b,),
        in_specs=[
            pl.BlockSpec((T, block_b, Din), lambda b: (0, b, 0)),
            pl.BlockSpec((block_b, T), lambda b: (b, 0)),
            pl.BlockSpec((block_b, H), lambda b: (b, 0)),
            pl.BlockSpec((Din, 2 * H), lambda b: (0, 0)),
            pl.BlockSpec((H, Dout), lambda b: (0, 0)),
        ],
        out_specs=(
            pl.BlockSpec((T, block_b, Dout), lambda b: (0, b, 0)),
            pl.BlockSpec((block_b, H), lambda b: (b, 0)),
        ),
        scratch_shapes=[pltpu.VMEM((T * block_b, H), jnp.float32),
                        pltpu.VMEM((T * block_b, H), jnp.float32)],
        compiler_params=pltpu.CompilerParams(dimension_semantics=("parallel",)),
    )(x_t, is_init_bt, h0_2d, w_hg, w_out)

    out = jnp.transpose(out_t, (1, 0, 2))[:B]         # (B, T, Dout)
    return out, h_n[:B, None, :]                      # (B, 1, H)


def mingru_reference(x, is_init, h0, w_hg, w_out):
    """Pure-JAX mirror of the PyTorch forward (T>1 path) for validation."""
    B, T, _ = x.shape
    H = h0.shape[-1]
    hg = x @ w_hg
    hidden, gate = hg[..., :H], hg[..., H:]           # == .chunk(2, dim=-1)
    log_coeffs = -jax.nn.softplus(gate)
    log_z = -jax.nn.softplus(-gate)
    log_tilde_h = jnp.where(hidden >= 0.0,
                            jnp.log(jax.nn.relu(hidden) + 0.5),
                            -jax.nn.softplus(-hidden))
    log_values = log_z + log_tilde_h
    b = jnp.broadcast_to(is_init.astype(jnp.float32), log_values.shape)
    log_h0 = jnp.log(h0)[:, 0]                        # (B, H)
    logA = jnp.zeros((B, H), jnp.float32)
    logB = jnp.full((B, H), -jnp.inf, jnp.float32)
    hs = []
    for t in range(T):
        logA2, logB2, b2 = log_coeffs[:, t], log_values[:, t], b[:, t]
        logA_n = logA2 * (1.0 - b2) + logA * b2
        logB_n = jnp.logaddexp(logA2 + logB, logB2) * (1.0 - b2) + logB2 * b2
        logA, logB = logA_n, logB_n
        hs.append(jnp.exp(jnp.logaddexp(logA + log_h0, logB)))
    h = jnp.stack(hs, axis=1)                         # (B, T, H)
    return h @ w_out, h[:, -1:]


if __name__ == "__main__":
    # Lane-dense hidden/output dims (128) and 2 batch blocks of 8 sequences.
    B, T, Din, H, Dout = 16, 8, 64, 128, 128

    key = jax.random.PRNGKey(0)
    k_x, k_hg, k_out, k_h0 = jax.random.split(key, 4)
    x = jax.random.normal(k_x, (B, T, Din), jnp.float32)

    # Linear-style init U(-1/sqrt(fan_in), 1/sqrt(fan_in)), stored transposed as
    # (in_features, out_features); fused [hidden | gate] columns.
    w_hg = jax.random.uniform(k_hg, (Din, 2 * H), jnp.float32, -1.0, 1.0) * (Din ** -0.5)
    w_out = jax.random.uniform(k_out, (H, Dout), jnp.float32, -1.0, 1.0) * (H ** -0.5)

    # Reset flags: a few resets across the batch to exercise the branch.
    is_init = (jnp.zeros((B, T, 1), jnp.float32)
               .at[0, 4, 0].set(1.0)
               .at[1, 2, 0].set(1.0)
               .at[9, 0, 0].set(1.0))
    # Default h_0 = zeros (log -> -inf, as in the PyTorch module); a few rows
    # get positive initial states to exercise the log(h_0) path.
    h0 = jnp.zeros((B, 1, H), jnp.float32)
    h0 = h0.at[2:5].set(jax.random.uniform(k_h0, (3, 1, H), jnp.float32, 0.05, 1.0))

    out, h_n = mingru_forward(x, is_init, h0, w_hg, w_out)
    jax.block_until_ready((out, h_n))

    ref_out, ref_hn = mingru_reference(x, is_init, h0, w_hg, w_out)
    assert out.shape == (B, T, Dout) and h_n.shape == (B, 1, H)
    assert bool(jnp.allclose(out, ref_out, rtol=1e-3, atol=1e-3))
    assert bool(jnp.allclose(h_n, ref_hn, rtol=1e-3, atol=1e-3))
    print("KERNEL_OK")
</pallas_src>

<mosaic_0001>
module attributes {stable_mosaic.version = 11 : i64} {
  func.func @mingru_scan_kernel(%arg0: i32, %arg1: memref<8x8x64xf32, #tpu.memory_space<vmem>>, %arg2: memref<8x8xf32, #tpu.memory_space<vmem>>, %arg3: memref<8x128xf32, #tpu.memory_space<vmem>>, %arg4: memref<64x256xf32, #tpu.memory_space<vmem>>, %arg5: memref<128x128xf32, #tpu.memory_space<vmem>>, %arg6: memref<8x8x128xf32, #tpu.memory_space<vmem>>, %arg7: memref<8x128xf32, #tpu.memory_space<vmem>>, %arg8: memref<64x128xf32, #tpu.memory_space<vmem>>, %arg9: memref<64x128xf32, #tpu.memory_space<vmem>>) attributes {dimension_semantics = [#tpu.dimension_semantics<parallel>], iteration_bounds = array<i64: 2>, scalar_prefetch = 0 : i64, scratch_operands = 2 : i64, tpu.core_type = #tpu.core_type<tc>, window_params = [{transform_indices = @transform_0, window_bounds = array<i64: 8, 8, 64>}, {transform_indices = @transform_1, window_bounds = array<i64: 8, 8>}, {transform_indices = @transform_2, window_bounds = array<i64: 8, 128>}, {pipeline_mode = #tpu.pipeline_mode<synchronous>, transform_indices = @transform_3, window_bounds = array<i64: 64, 256>}, {pipeline_mode = #tpu.pipeline_mode<synchronous>, transform_indices = @transform_4, window_bounds = array<i64: 128, 128>}, {transform_indices = @transform_5, window_bounds = array<i64: 8, 8, 128>}, {transform_indices = @transform_6, window_bounds = array<i64: 8, 128>}]} {
    %c0 = arith.constant 0 : index
    %c0_0 = arith.constant 0 : index
    %c0_1 = arith.constant 0 : index
    %0 = vector.load %arg1[%c0, %c0_0, %c0_1] : memref<8x8x64xf32, #tpu.memory_space<vmem>>, vector<8x8x64xf32>
    %1 = vector.shape_cast %0 : vector<8x8x64xf32> to vector<64x64xf32>
    %c0_2 = arith.constant 0 : index
    %c0_3 = arith.constant 0 : index
    %2 = vector.load %arg4[%c0_2, %c0_3] : memref<64x256xf32, #tpu.memory_space<vmem>>, vector<64x256xf32>
    %cst = arith.constant dense<0.000000e+00> : vector<64x256xf32>
    %3 = tpu.matmul %1, %2, %cst {dimension_numbers = #tpu.dot_dimension_numbers<[1], [0], [0], [1], [0, 0, 1, 1], [], []>} : vector<64x64xf32>, vector<64x256xf32>, vector<64x256xf32> -> vector<64x256xf32>
    %4 = vector.extract_strided_slice %3 {offsets = [0, 0], sizes = [64, 128], strides = [1, 1]} : vector<64x256xf32> to vector<64x128xf32>
    %5 = vector.extract_strided_slice %3 {offsets = [0, 128], sizes = [64, 128], strides = [1, 1]} : vector<64x256xf32> to vector<64x128xf32>
    %cst_4 = arith.constant 0.000000e+00 : f32
    %6 = vector.broadcast %cst_4 : f32 to vector<64x128xf32>
    %7 = arith.maximumf %5, %6 : vector<64x128xf32>
    %8 = vector.broadcast %cst_4 : f32 to vector<64x128xf32>
    %9 = arith.subf %5, %8 : vector<64x128xf32>
    %10 = arith.cmpf one, %9, %9 : vector<64x128xf32>
    %11 = vector.broadcast %cst_4 : f32 to vector<64x128xf32>
    %12 = arith.addf %5, %11 : vector<64x128xf32>
    %13 = math.absf %9 : vector<64x128xf32>
    %cst_5 = arith.constant 0.000000e+00 : f32
    %14 = vector.broadcast %cst_5 : f32 to vector<64x128xf32>
    %15 = arith.subf %14, %13 : vector<64x128xf32>
    %16 = math.exp %15 : vector<64x128xf32>
    %17 = math.log1p %16 : vector<64x128xf32>
    %18 = arith.addf %7, %17 : vector<64x128xf32>
    %19 = arith.select %10, %12, %18 : vector<64x128xi1>, vector<64x128xf32>
    %cst_6 = arith.constant 0.000000e+00 : f32
    %20 = vector.broadcast %cst_6 : f32 to vector<64x128xf32>
    %21 = arith.subf %20, %19 : vector<64x128xf32>
    %cst_7 = arith.constant 0.000000e+00 : f32
    %22 = vector.broadcast %cst_7 : f32 to vector<64x128xf32>
    %23 = arith.subf %22, %5 : vector<64x128xf32>
    %cst_8 = arith.constant 0.000000e+00 : f32
    %24 = vector.broadcast %cst_8 : f32 to vector<64x128xf32>
    %25 = arith.maximumf %23, %24 : vector<64x128xf32>
    %26 = vector.broadcast %cst_8 : f32 to vector<64x128xf32>
    %27 = arith.subf %23, %26 : vector<64x128xf32>
    %28 = arith.cmpf one, %27, %27 : vector<64x128xf32>
    %29 = vector.broadcast %cst_8 : f32 to vector<64x128xf32>
    %30 = arith.addf %23, %29 : vector<64x128xf32>
    %31 = math.absf %27 : vector<64x128xf32>
    %cst_9 = arith.constant 0.000000e+00 : f32
    %32 = vector.broadcast %cst_9 : f32 to vector<64x128xf32>
    %33 = arith.subf %32, %31 : vector<64x128xf32>
    %34 = math.exp %33 : vector<64x128xf32>
    %35 = math.log1p %34 : vector<64x128xf32>
    %36 = arith.addf %25, %35 : vector<64x128xf32>
    %37 = arith.select %28, %30, %36 : vector<64x128xi1>, vector<64x128xf32>
    %cst_10 = arith.constant 0.000000e+00 : f32
    %38 = vector.broadcast %cst_10 : f32 to vector<64x128xf32>
    %39 = arith.subf %38, %37 : vector<64x128xf32>
    %cst_11 = arith.constant 0.000000e+00 : f32
    %40 = vector.broadcast %cst_11 : f32 to vector<64x128xf32>
    %41 = arith.cmpf oge, %4, %40 : vector<64x128xf32>
    %cst_12 = arith.constant 0.000000e+00 : f32
    %42 = vector.broadcast %cst_12 : f32 to vector<64x128xf32>
    %43 = arith.maximumf %4, %42 : vector<64x128xf32>
    %cst_13 = arith.constant 5.000000e-01 : f32
    %44 = vector.broadcast %cst_13 : f32 to vector<64x128xf32>
    %45 = arith.addf %43, %44 : vector<64x128xf32>
    %46 = math.log %45 : vector<64x128xf32>
    %cst_14 = arith.constant 0.000000e+00 : f32
    %47 = vector.broadcast %cst_14 : f32 to vector<64x128xf32>
    %48 = arith.subf %47, %4 : vector<64x128xf32>
    %cst_15 = arith.constant 0.000000e+00 : f32
    %49 = vector.broadcast %cst_15 : f32 to vector<64x128xf32>
    %50 = arith.maximumf %48, %49 : vector<64x128xf32>
    %51 = vector.broadcast %cst_15 : f32 to vector<64x128xf32>
    %52 = arith.subf %48, %51 : vector<64x128xf32>
    %53 = arith.cmpf one, %52, %52 : vector<64x128xf32>
    %54 = vector.broadcast %cst_15 : f32 to vector<64x128xf32>
    %55 = arith.addf %48, %54 : vector<64x128xf32>
    %56 = math.absf %52 : vector<64x128xf32>
    %cst_16 = arith.constant 0.000000e+00 : f32
    %57 = vector.broadcast %cst_16 : f32 to vector<64x128xf32>
    %58 = arith.subf %57, %56 : vector<64x128xf32>
    %59 = math.exp %58 : vector<64x128xf32>
    %60 = math.log1p %59 : vector<64x128xf32>
    %61 = arith.addf %50, %60 : vector<64x128xf32>
    %62 = arith.select %53, %55, %61 : vector<64x128xi1>, vector<64x128xf32>
    %cst_17 = arith.constant 0.000000e+00 : f32
    %63 = vector.broadcast %cst_17 : f32 to vector<64x128xf32>
    %64 = arith.subf %63, %62 : vector<64x128xf32>
    %65 = arith.select %41, %46, %64 : vector<64x128xi1>, vector<64x128xf32>
    %66 = arith.addf %39, %65 : vector<64x128xf32>
    %c0_18 = arith.constant 0 : index
    %c0_19 = arith.constant 0 : index
    %67 = vector.load %arg3[%c0_18, %c0_19] : memref<8x128xf32, #tpu.memory_space<vmem>>, vector<8x128xf32>
    %68 = math.log %67 : vector<8x128xf32>
    %c0_20 = arith.constant 0 : index
    %c0_21 = arith.constant 0 : index
    %69 = vector.load %arg2[%c0_20, %c0_21] : memref<8x8xf32, #tpu.memory_space<vmem>>, vector<8x8xf32>
    %cst_22 = arith.constant 0.000000e+00 : f32
    %70 = vector.broadcast %cst_22 : f32 to vector<8x128xf32>
    %cst_23 = arith.constant 0xFF800000 : f32
    %71 = vector.broadcast %cst_23 : f32 to vector<8x128xf32>
    %72 = vector.extract_strided_slice %21 {offsets = [0, 0], sizes = [8, 128], strides = [1, 1]} : vector<64x128xf32> to vector<8x128xf32>
    %73 = vector.extract_strided_slice %66 {offsets = [0, 0], sizes = [8, 128], strides = [1, 1]} : vector<64x128xf32> to vector<8x128xf32>
    %74 = vector.extract_strided_slice %69 {offsets = [0, 0], sizes = [8, 1], strides = [1, 1]} : vector<8x8xf32> to vector<8x1xf32>
    %cst_24 = arith.constant 5.000000e-01 : f32
    %75 = vector.broadcast %cst_24 : f32 to vector<8x1xf32>
    %76 = arith.cmpf ogt, %74, %75 : vector<8x1xf32>
    %77 = vector.shape_cast %76 : vector<8x1xi1> to vector<8x1xi1>
    %78 = vector.broadcast %77 : vector<8x1xi1> to vector<8x128xi1>
    %79 = arith.select %78, %70, %72 : vector<8x128xi1>, vector<8x128xf32>
    %80 = arith.addf %72, %71 : vector<8x128xf32>
    %81 = arith.maximumf %80, %73 : vector<8x128xf32>
    %82 = arith.subf %80, %73 : vector<8x128xf32>
    %83 = arith.cmpf one, %82, %82 : vector<8x128xf32>
    %84 = arith.addf %80, %73 : vector<8x128xf32>
    %85 = math.absf %82 : vector<8x128xf32>
    %cst_25 = arith.constant 0.000000e+00 : f32
    %86 = vector.broadcast %cst_25 : f32 to vector<8x128xf32>
    %87 = arith.subf %86, %85 : vector<8x128xf32>
    %88 = math.exp %87 : vector<8x128xf32>
    %89 = math.log1p %88 : vector<8x128xf32>
    %90 = arith.addf %81, %89 : vector<8x128xf32>
    %91 = arith.select %83, %84, %90 : vector<8x128xi1>, vector<8x128xf32>
    %92 = vector.shape_cast %76 : vector<8x1xi1> to vector<8x1xi1>
    %93 = vector.broadcast %92 : vector<8x1xi1> to vector<8x128xi1>
    %94 = arith.select %93, %73, %91 : vector<8x128xi1>, vector<8x128xf32>
    %95 = arith.addf %79, %68 : vector<8x128xf32>
    %c0_26 = arith.constant 0 : index
    %c0_27 = arith.constant 0 : index
    %96 = vector.load %arg8[%c0_26, %c0_27] : memref<64x128xf32, #tpu.memory_space<vmem>>, vector<8x128xf32>
    tpu.vector_store %arg8[%c0_26, %c0_27], %95 {strides = array<i32>} : memref<64x128xf32, #tpu.memory_space<vmem>>, vector<8x128xf32>,
    %c0_28 = arith.constant 0 : index
    %c0_29 = arith.constant 0 : index
    %97 = vector.load %arg9[%c0_28, %c0_29] : memref<64x128xf32, #tpu.memory_space<vmem>>, vector<8x128xf32>
    tpu.vector_store %arg9[%c0_28, %c0_29], %94 {strides = array<i32>} : memref<64x128xf32, #tpu.memory_space<vmem>>, vector<8x128xf32>,
    %98 = vector.extract_strided_slice %21 {offsets = [8, 0], sizes = [8, 128], strides = [1, 1]} : vector<64x128xf32> to vector<8x128xf32>
    %99 = vector.extract_strided_slice %66 {offsets = [8, 0], sizes = [8, 128], strides = [1, 1]} : vector<64x128xf32> to vector<8x128xf32>
    %100 = vector.extract_strided_slice %69 {offsets = [0, 1], sizes = [8, 1], strides = [1, 1]} : vector<8x8xf32> to vector<8x1xf32>
    %cst_30 = arith.constant 5.000000e-01 : f32
    %101 = vector.broadcast %cst_30 : f32 to vector<8x1xf32>
    %102 = arith.cmpf ogt, %100, %101 : vector<8x1xf32>
    %103 = vector.shape_cast %102 : vector<8x1xi1> to vector<8x1xi1>
    %104 = vector.broadcast %103 : vector<8x1xi1> to vector<8x128xi1>
    %105 = arith.select %104, %79, %98 : vector<8x128xi1>, vector<8x128xf32>
    %106 = arith.addf %98, %94 : vector<8x128xf32>
    %107 = arith.maximumf %106, %99 : vector<8x128xf32>
    %108 = arith.subf %106, %99 : vector<8x128xf32>
    %109 = arith.cmpf one, %108, %108 : vector<8x128xf32>
    %110 = arith.addf %106, %99 : vector<8x128xf32>
    %111 = math.absf %108 : vector<8x128xf32>
    %cst_31 = arith.constant 0.000000e+00 : f32
    %112 = vector.broadcast %cst_31 : f32 to vector<8x128xf32>
    %113 = arith.subf %112, %111 : vector<8x128xf32>
    %114 = math.exp %113 : vector<8x128xf32>
    %115 = math.log1p %114 : vector<8x128xf32>
    %116 = arith.addf %107, %115 : vector<8x128xf32>
    %117 = arith.select %109, %110, %116 : vector<8x128xi1>, vector<8x128xf32>
    %118 = vector.shape_cast %102 : vector<8x1xi1> to vector<8x1xi1>
    %119 = vector.broadcast %118 : vector<8x1xi1> to vector<8x128xi1>
    %120 = arith.select %119, %99, %117 : vector<8x128xi1>, vector<8x128xf32>
    %121 = arith.addf %105, %68 : vector<8x128xf32>
    %c8 = arith.constant 8 : index
    %c0_32 = arith.constant 0 : index
    %122 = vector.load %arg8[%c8, %c0_32] : memref<64x128xf32, #tpu.memory_space<vmem>>, vector<8x128xf32>
    tpu.vector_store %arg8[%c8, %c0_32], %121 {strides = array<i32>} : memref<64x128xf32, #tpu.memory_space<vmem>>, vector<8x128xf32>,
    %c8_33 = arith.constant 8 : index
    %c0_34 = arith.constant 0 : index
    %123 = vector.load %arg9[%c8_33, %c0_34] : memref<64x128xf32, #tpu.memory_space<vmem>>, vector<8x128xf32>
    tpu.vector_store %arg9[%c8_33, %c0_34], %120 {strides = array<i32>} : memref<64x128xf32, #tpu.memory_space<vmem>>, vector<8x128xf32>,
    %124 = vector.extract_strided_slice %21 {offsets = [16, 0], sizes = [8, 128], strides = [1, 1]} : vector<64x128xf32> to vector<8x128xf32>
    %125 = vector.extract_strided_slice %66 {offsets = [16, 0], sizes = [8, 128], strides = [1, 1]} : vector<64x128xf32> to vector<8x128xf32>
    %126 = vector.extract_strided_slice %69 {offsets = [0, 2], sizes = [8, 1], strides = [1, 1]} : vector<8x8xf32> to vector<8x1xf32>
    %cst_35 = arith.constant 5.000000e-01 : f32
    %127 = vector.broadcast %cst_35 : f32 to vector<8x1xf32>
    %128 = arith.cmpf ogt, %126, %127 : vector<8x1xf32>
    %129 = vector.shape_cast %128 : vector<8x1xi1> to vector<8x1xi1>
    %130 = vector.broadcast %129 : vector<8x1xi1> to vector<8x128xi1>
    %131 = arith.select %130, %105, %124 : vector<8x128xi1>, vector<8x128xf32>
    %132 = arith.addf %124, %120 : vector<8x128xf32>
    %133 = arith.maximumf %132, %125 : vector<8x128xf32>
    %134 = arith.subf %132, %125 : vector<8x128xf32>
    %135 = arith.cmpf one, %134, %134 : vector<8x128xf32>
    %136 = arith.addf %132, %125 : vector<8x128xf32>
    %137 = math.absf %134 : vector<8x128xf32>
    %cst_36 = arith.constant 0.000000e+00 : f32
    %138 = vector.broadcast %cst_36 : f32 to vector<8x128xf32>
    %139 = arith.subf %138, %137 : vector<8x128xf32>
    %140 = math.exp %139 : vector<8x128xf32>
    %141 = math.log1p %140 : vector<8x128xf32>
    %142 = arith.addf %133, %141 : vector<8x128xf32>
    %143 = arith.select %135, %136, %142 : vector<8x128xi1>, vector<8x128xf32>
    %144 = vector.shape_cast %128 : vector<8x1xi1> to vector<8x1xi1>
    %145 = vector.broadcast %144 : vector<8x1xi1> to vector<8x128xi1>
    %146 = arith.select %145, %125, %143 : vector<8x128xi1>, vector<8x128xf32>
    %147 = arith.addf %131, %68 : vector<8x128xf32>
    %c16 = arith.constant 16 : index
    %c0_37 = arith.constant 0 : index
    %148 = vector.load %arg8[%c16, %c0_37] : memref<64x128xf32, #tpu.memory_space<vmem>>, vector<8x128xf32>
    tpu.vector_store %arg8[%c16, %c0_37], %147 {strides = array<i32>} : memref<64x128xf32, #tpu.memory_space<vmem>>, vector<8x128xf32>,
    %c16_38 = arith.constant 16 : index
    %c0_39 = arith.constant 0 : index
    %149 = vector.load %arg9[%c16_38, %c0_39] : memref<64x128xf32, #tpu.memory_space<vmem>>, vector<8x128xf32>
    tpu.vector_store %arg9[%c16_38, %c0_39], %146 {strides = array<i32>} : memref<64x128xf32, #tpu.memory_space<vmem>>, vector<8x128xf32>,
    %150 = vector.extract_strided_slice %21 {offsets = [24, 0], sizes = [8, 128], strides = [1, 1]} : vector<64x128xf32> to vector<8x128xf32>
    %151 = vector.extract_strided_slice %66 {offsets = [24, 0], sizes = [8, 128], strides = [1, 1]} : vector<64x128xf32> to vector<8x128xf32>
    %152 = vector.extract_strided_slice %69 {offsets = [0, 3], sizes = [8, 1], strides = [1, 1]} : vector<8x8xf32> to vector<8x1xf32>
    %cst_40 = arith.constant 5.000000e-01 : f32
    %153 = vector.broadcast %cst_40 : f32 to vector<8x1xf32>
    %154 = arith.cmpf ogt, %152, %153 : vector<8x1xf32>
    %155 = vector.shape_cast %154 : vector<8x1xi1> to vector<8x1xi1>
    %156 = vector.broadcast %155 : vector<8x1xi1> to vector<8x128xi1>
    %157 = arith.select %156, %131, %150 : vector<8x128xi1>, vector<8x128xf32>
    %158 = arith.addf %150, %146 : vector<8x128xf32>
    %159 = arith.maximumf %158, %151 : vector<8x128xf32>
    %160 = arith.subf %158, %151 : vector<8x128xf32>
    %161 = arith.cmpf one, %160, %160 : vector<8x128xf32>
    %162 = arith.addf %158, %151 : vector<8x128xf32>
    %163 = math.absf %160 : vector<8x128xf32>
    %cst_41 = arith.constant 0.000000e+00 : f32
    %164 = vector.broadcast %cst_41 : f32 to vector<8x128xf32>
    %165 = arith.subf %164, %163 : vector<8x128xf32>
    %166 = math.exp %165 : vector<8x128xf32>
    %167 = math.log1p %166 : vector<8x128xf32>
    %168 = arith.addf %159, %167 : vector<8x128xf32>
    %169 = arith.select %161, %162, %168 : vector<8x128xi1>, vector<8x128xf32>
    %170 = vector.shape_cast %154 : vector<8x1xi1> to vector<8x1xi1>
    %171 = vector.broadcast %170 : vector<8x1xi1> to vector<8x128xi1>
    %172 = arith.select %171, %151, %169 : vector<8x128xi1>, vector<8x128xf32>
    %173 = arith.addf %157, %68 : vector<8x128xf32>
    %c24 = arith.constant 24 : index
    %c0_42 = arith.constant 0 : index
    %174 = vector.load %arg8[%c24, %c0_42] : memref<64x128xf32, #tpu.memory_space<vmem>>, vector<8x128xf32>
    tpu.vector_store %arg8[%c24, %c0_42], %173 {strides = array<i32>} : memref<64x128xf32, #tpu.memory_space<vmem>>, vector<8x128xf32>,
    %c24_43 = arith.constant 24 : index
    %c0_44 = arith.constant 0 : index
    %175 = vector.load %arg9[%c24_43, %c0_44] : memref<64x128xf32, #tpu.memory_space<vmem>>, vector<8x128xf32>
    tpu.vector_store %arg9[%c24_43, %c0_44], %172 {strides = array<i32>} : memref<64x128xf32, #tpu.memory_space<vmem>>, vector<8x128xf32>,
    %176 = vector.extract_strided_slice %21 {offsets = [32, 0], sizes = [8, 128], strides = [1, 1]} : vector<64x128xf32> to vector<8x128xf32>
    %177 = vector.extract_strided_slice %66 {offsets = [32, 0], sizes = [8, 128], strides = [1, 1]} : vector<64x128xf32> to vector<8x128xf32>
    %178 = vector.extract_strided_slice %69 {offsets = [0, 4], sizes = [8, 1], strides = [1, 1]} : vector<8x8xf32> to vector<8x1xf32>
    %cst_45 = arith.constant 5.000000e-01 : f32
    %179 = vector.broadcast %cst_45 : f32 to vector<8x1xf32>
    %180 = arith.cmpf ogt, %178, %179 : vector<8x1xf32>
    %181 = vector.shape_cast %180 : vector<8x1xi1> to vector<8x1xi1>
    %182 = vector.broadcast %181 : vector<8x1xi1> to vector<8x128xi1>
    %183 = arith.select %182, %157, %176 : vector<8x128xi1>, vector<8x128xf32>
    %184 = arith.addf %176, %172 : vector<8x128xf32>
    %185 = arith.maximumf %184, %177 : vector<8x128xf32>
    %186 = arith.subf %184, %177 : vector<8x128xf32>
    %187 = arith.cmpf one, %186, %186 : vector<8x128xf32>
    %188 = arith.addf %184, %177 : vector<8x128xf32>
    %189 = math.absf %186 : vector<8x128xf32>
    %cst_46 = arith.constant 0.000000e+00 : f32
    %190 = vector.broadcast %cst_46 : f32 to vector<8x128xf32>
    %191 = arith.subf %190, %189 : vector<8x128xf32>
    %192 = math.exp %191 : vector<8x128xf32>
    %193 = math.log1p %192 : vector<8x128xf32>
    %194 = arith.addf %185, %193 : vector<8x128xf32>
    %195 = arith.select %187, %188, %194 : vector<8x128xi1>, vector<8x128xf32>
    %196 = vector.shape_cast %180 : vector<8x1xi1> to vector<8x1xi1>
    %197 = vector.broadcast %196 : vector<8x1xi1> to vector<8x128xi1>
    %198 = arith.select %197, %177, %195 : vector<8x128xi1>, vector<8x128xf32>
    %199 = arith.addf %183, %68 : vector<8x128xf32>
    %c32 = arith.constant 32 : index
    %c0_47 = arith.constant 0 : index
    %200 = vector.load %arg8[%c32, %c0_47] : memref<64x128xf32, #tpu.memory_space<vmem>>, vector<8x128xf32>
    tpu.vector_store %arg8[%c32, %c0_47], %199 {strides = array<i32>} : memref<64x128xf32, #tpu.memory_space<vmem>>, vector<8x128xf32>,
    %c32_48 = arith.constant 32 : index
    %c0_49 = arith.constant 0 : index
    %201 = vector.load %arg9[%c32_48, %c0_49] : memref<64x128xf32, #tpu.memory_space<vmem>>, vector<8x128xf32>
    tpu.vector_store %arg9[%c32_48, %c0_49], %198 {strides = array<i32>} : memref<64x128xf32, #tpu.memory_space<vmem>>, vector<8x128xf32>,
    %202 = vector.extract_strided_slice %21 {offsets = [40, 0], sizes = [8, 128], strides = [1, 1]} : vector<64x128xf32> to vector<8x128xf32>
    %203 = vector.extract_strided_slice %66 {offsets = [40, 0], sizes = [8, 128], strides = [1, 1]} : vector<64x128xf32> to vector<8x128xf32>
    %204 = vector.extract_strided_slice %69 {offsets = [0, 5], sizes = [8, 1], strides = [1, 1]} : vector<8x8xf32> to vector<8x1xf32>
    %cst_50 = arith.constant 5.000000e-01 : f32
    %205 = vector.broadcast %cst_50 : f32 to vector<8x1xf32>
    %206 = arith.cmpf ogt, %204, %205 : vector<8x1xf32>
    %207 = vector.shape_cast %206 : vector<8x1xi1> to vector<8x1xi1>
    %208 = vector.broadcast %207 : vector<8x1xi1> to vector<8x128xi1>
    %209 = arith.select %208, %183, %202 : vector<8x128xi1>, vector<8x128xf32>
    %210 = arith.addf %202, %198 : vector<8x128xf32>
    %211 = arith.maximumf %210, %203 : vector<8x128xf32>
    %212 = arith.subf %210, %203 : vector<8x128xf32>
    %213 = arith.cmpf one, %212, %212 : vector<8x128xf32>
    %214 = arith.addf %210, %203 : vector<8x128xf32>
    %215 = math.absf %212 : vector<8x128xf32>
    %cst_51 = arith.constant 0.000000e+00 : f32
    %216 = vector.broadcast %cst_51 : f32 to vector<8x128xf32>
    %217 = arith.subf %216, %215 : vector<8x128xf32>
    %218 = math.exp %217 : vector<8x128xf32>
    %219 = math.log1p %218 : vector<8x128xf32>
    %220 = arith.addf %211, %219 : vector<8x128xf32>
    %221 = arith.select %213, %214, %220 : vector<8x128xi1>, vector<8x128xf32>
    %222 = vector.shape_cast %206 : vector<8x1xi1> to vector<8x1xi1>
    %223 = vector.broadcast %222 : vector<8x1xi1> to vector<8x128xi1>
    %224 = arith.select %223, %203, %221 : vector<8x128xi1>, vector<8x128xf32>
    %225 = arith.addf %209, %68 : vector<8x128xf32>
    %c40 = arith.constant 40 : index
    %c0_52 = arith.constant 0 : index
    %226 = vector.load %arg8[%c40, %c0_52] : memref<64x128xf32, #tpu.memory_space<vmem>>, vector<8x128xf32>
    tpu.vector_store %arg8[%c40, %c0_52], %225 {strides = array<i32>} : memref<64x128xf32, #tpu.memory_space<vmem>>, vector<8x128xf32>,
    %c40_53 = arith.constant 40 : index
    %c0_54 = arith.constant 0 : index
    %227 = vector.load %arg9[%c40_53, %c0_54] : memref<64x128xf32, #tpu.memory_space<vmem>>, vector<8x128xf32>
    tpu.vector_store %arg9[%c40_53, %c0_54], %224 {strides = array<i32>} : memref<64x128xf32, #tpu.memory_space<vmem>>, vector<8x128xf32>,
    %228 = vector.extract_strided_slice %21 {offsets = [48, 0], sizes = [8, 128], strides = [1, 1]} : vector<64x128xf32> to vector<8x128xf32>
    %229 = vector.extract_strided_slice %66 {offsets = [48, 0], sizes = [8, 128], strides = [1, 1]} : vector<64x128xf32> to vector<8x128xf32>
    %230 = vector.extract_strided_slice %69 {offsets = [0, 6], sizes = [8, 1], strides = [1, 1]} : vector<8x8xf32> to vector<8x1xf32>
    %cst_55 = arith.constant 5.000000e-01 : f32
    %231 = vector.broadcast %cst_55 : f32 to vector<8x1xf32>
    %232 = arith.cmpf ogt, %230, %231 : vector<8x1xf32>
    %233 = vector.shape_cast %232 : vector<8x1xi1> to vector<8x1xi1>
    %234 = vector.broadcast %233 : vector<8x1xi1> to vector<8x128xi1>
    %235 = arith.select %234, %209, %228 : vector<8x128xi1>, vector<8x128xf32>
    %236 = arith.addf %228, %224 : vector<8x128xf32>
    %237 = arith.maximumf %236, %229 : vector<8x128xf32>
    %238 = arith.subf %236, %229 : vector<8x128xf32>
    %239 = arith.cmpf one, %238, %238 : vector<8x128xf32>
    %240 = arith.addf %236, %229 : vector<8x128xf32>
    %241 = math.absf %238 : vector<8x128xf32>
    %cst_56 = arith.constant 0.000000e+00 : f32
    %242 = vector.broadcast %cst_56 : f32 to vector<8x128xf32>
    %243 = arith.subf %242, %241 : vector<8x128xf32>
    %244 = math.exp %243 : vector<8x128xf32>
    %245 = math.log1p %244 : vector<8x128xf32>
    %246 = arith.addf %237, %245 : vector<8x128xf32>
    %247 = arith.select %239, %240, %246 : vector<8x128xi1>, vector<8x128xf32>
    %248 = vector.shape_cast %232 : vector<8x1xi1> to vector<8x1xi1>
    %249 = vector.broadcast %248 : vector<8x1xi1> to vector<8x128xi1>
    %250 = arith.select %249, %229, %247 : vector<8x128xi1>, vector<8x128xf32>
    %251 = arith.addf %235, %68 : vector<8x128xf32>
    %c48 = arith.constant 48 : index
    %c0_57 = arith.constant 0 : index
    %252 = vector.load %arg8[%c48, %c0_57] : memref<64x128xf32, #tpu.memory_space<vmem>>, vector<8x128xf32>
    tpu.vector_store %arg8[%c48, %c0_57], %251 {strides = array<i32>} : memref<64x128xf32, #tpu.memory_space<vmem>>, vector<8x128xf32>,
    %c48_58 = arith.constant 48 : index
    %c0_59 = arith.constant 0 : index
    %253 = vector.load %arg9[%c48_58, %c0_59] : memref<64x128xf32, #tpu.memory_space<vmem>>, vector<8x128xf32>
    tpu.vector_store %arg9[%c48_58, %c0_59], %250 {strides = array<i32>} : memref<64x128xf32, #tpu.memory_space<vmem>>, vector<8x128xf32>,
    %254 = vector.extract_strided_slice %21 {offsets = [56, 0], sizes = [8, 128], strides = [1, 1]} : vector<64x128xf32> to vector<8x128xf32>
    %255 = vector.extract_strided_slice %66 {offsets = [56, 0], sizes = [8, 128], strides = [1, 1]} : vector<64x128xf32> to vector<8x128xf32>
    %256 = vector.extract_strided_slice %69 {offsets = [0, 7], sizes = [8, 1], strides = [1, 1]} : vector<8x8xf32> to vector<8x1xf32>
    %cst_60 = arith.constant 5.000000e-01 : f32
    %257 = vector.broadcast %cst_60 : f32 to vector<8x1xf32>
    %258 = arith.cmpf ogt, %256, %257 : vector<8x1xf32>
    %259 = vector.shape_cast %258 : vector<8x1xi1> to vector<8x1xi1>
    %260 = vector.broadcast %259 : vector<8x1xi1> to vector<8x128xi1>
    %261 = arith.select %260, %235, %254 : vector<8x128xi1>, vector<8x128xf32>
    %262 = arith.addf %254, %250 : vector<8x128xf32>
    %263 = arith.maximumf %262, %255 : vector<8x128xf32>
    %264 = arith.subf %262, %255 : vector<8x128xf32>
    %265 = arith.cmpf one, %264, %264 : vector<8x128xf32>
    %266 = arith.addf %262, %255 : vector<8x128xf32>
    %267 = math.absf %264 : vector<8x128xf32>
    %cst_61 = arith.constant 0.000000e+00 : f32
    %268 = vector.broadcast %cst_61 : f32 to vector<8x128xf32>
    %269 = arith.subf %268, %267 : vector<8x128xf32>
    %270 = math.exp %269 : vector<8x128xf32>
    %271 = math.log1p %270 : vector<8x128xf32>
    %272 = arith.addf %263, %271 : vector<8x128xf32>
    %273 = arith.select %265, %266, %272 : vector<8x128xi1>, vector<8x128xf32>
    %274 = vector.shape_cast %258 : vector<8x1xi1> to vector<8x1xi1>
    %275 = vector.broadcast %274 : vector<8x1xi1> to vector<8x128xi1>
    %276 = arith.select %275, %255, %273 : vector<8x128xi1>, vector<8x128xf32>
    %277 = arith.addf %261, %68 : vector<8x128xf32>
    %c56 = arith.constant 56 : index
    %c0_62 = arith.constant 0 : index
    %278 = vector.load %arg8[%c56, %c0_62] : memref<64x128xf32, #tpu.memory_space<vmem>>, vector<8x128xf32>
    tpu.vector_store %arg8[%c56, %c0_62], %277 {strides = array<i32>} : memref<64x128xf32, #tpu.memory_space<vmem>>, vector<8x128xf32>,
    %c56_63 = arith.constant 56 : index
    %c0_64 = arith.constant 0 : index
    %279 = vector.load %arg9[%c56_63, %c0_64] : memref<64x128xf32, #tpu.memory_space<vmem>>, vector<8x128xf32>
    tpu.vector_store %arg9[%c56_63, %c0_64], %276 {strides = array<i32>} : memref<64x128xf32, #tpu.memory_space<vmem>>, vector<8x128xf32>,
    %c0_65 = arith.constant 0 : index
    %c0_66 = arith.constant 0 : index
    %280 = vector.load %arg8[%c0_65, %c0_66] : memref<64x128xf32, #tpu.memory_space<vmem>>, vector<64x128xf32>
    %281 = math.exp %280 : vector<64x128xf32>
    %c0_67 = arith.constant 0 : index
    %c0_68 = arith.constant 0 : index
    %282 = vector.load %arg9[%c0_67, %c0_68] : memref<64x128xf32, #tpu.memory_space<vmem>>, vector<64x128xf32>
    %283 = math.exp %282 : vector<64x128xf32>
    %284 = arith.addf %281, %283 : vector<64x128xf32>
    %c0_69 = arith.constant 0 : index
    %c0_70 = arith.constant 0 : index
    %285 = vector.load %arg5[%c0_69, %c0_70] : memref<128x128xf32, #tpu.memory_space<vmem>>, vector<128x128xf32>
    %cst_71 = arith.constant dense<0.000000e+00> : vector<64x128xf32>
    %286 = tpu.matmul %284, %285, %cst_71 {dimension_numbers = #tpu.dot_dimension_numbers<[1], [0], [0], [1], [0, 0, 1, 1], [], []>} : vector<64x128xf32>, vector<128x128xf32>, vector<64x128xf32> -> vector<64x128xf32>
    %287 = vector.shape_cast %286 : vector<64x128xf32> to vector<8x8x128xf32>
    %c0_72 = arith.constant 0 : index
    %c0_73 = arith.constant 0 : index
    %c0_74 = arith.constant 0 : index
    %288 = vector.load %arg6[%c0_72, %c0_73, %c0_74] : memref<8x8x128xf32, #tpu.memory_space<vmem>>, vector<8x8x128xf32>
    tpu.vector_store %arg6[%c0_72, %c0_73, %c0_74], %287 {strides = array<i32>} : memref<8x8x128xf32, #tpu.memory_space<vmem>>, vector<8x8x128xf32>,
    %289 = vector.extract_strided_slice %284 {offsets = [56, 0], sizes = [8, 128], strides = [1, 1]} : vector<64x128xf32> to vector<8x128xf32>
    %c0_75 = arith.constant 0 : index
    %c0_76 = arith.constant 0 : index
    %290 = vector.load %arg7[%c0_75, %c0_76] : memref<8x128xf32, #tpu.memory_space<vmem>>, vector<8x128xf32>
    tpu.vector_store %arg7[%c0_75, %c0_76], %289 {strides = array<i32>} : memref<8x128xf32, #tpu.memory_space<vmem>>, vector<8x128xf32>,
    return
  }
  func.func @transform_0(%arg0: i32) -> (i32, i32, i32) {
    %c0_i32 = arith.constant 0 : i32
    %c0_i32_0 = arith.constant 0 : i32
    %c0_i32_1 = arith.constant 0 : i32
    return %c0_i32, %arg0, %c0_i32_0 : i32, i32, i32
  }
  func.func @transform_1(%arg0: i32) -> (i32, i32) {
    %c0_i32 = arith.constant 0 : i32
    %c0_i32_0 = arith.constant 0 : i32
    return %arg0, %c0_i32 : i32, i32
  }
  func.func @transform_2(%arg0: i32) -> (i32, i32) {
    %c0_i32 = arith.constant 0 : i32
    %c0_i32_0 = arith.constant 0 : i32
    return %arg0, %c0_i32 : i32, i32
  }
  func.func @transform_3(%arg0: i32) -> (i32, i32) {
    %c0_i32 = arith.constant 0 : i32
    %c0_i32_0 = arith.constant 0 : i32
    %c0_i32_1 = arith.constant 0 : i32
    return %c0_i32, %c0_i32_0 : i32, i32
  }
  func.func @transform_4(%arg0: i32) -> (i32, i32) {
    %c0_i32 = arith.constant 0 : i32
    %c0_i32_0 = arith.constant 0 : i32
    %c0_i32_1 = arith.constant 0 : i32
    return %c0_i32, %c0_i32_0 : i32, i32
  }
  func.func @transform_5(%arg0: i32) -> (i32, i32, i32) {
    %c0_i32 = arith.constant 0 : i32
    %c0_i32_0 = arith.constant 0 : i32
    %c0_i32_1 = arith.constant 0 : i32
    return %c0_i32, %arg0, %c0_i32_0 : i32, i32, i32
  }
  func.func @transform_6(%arg0: i32) -> (i32, i32) {
    %c0_i32 = arith.constant 0 : i32
    %c0_i32_0 = arith.constant 0 : i32
    return %arg0, %c0_i32 : i32, i32
  }
}

</mosaic_0001>

<llo_original>
// kernel: tpu_custom_call.1
$region0: #{tpu_custom_call.1}
  #allocation0 [shape = 'u32[]', space=smem, size = 0x4, offset = 0x4, fixed_abs, tag = 'smem constant byte address 0x4 - core index']
  #allocation1 [shape = 'u32[144,128]{1,0:T(1,128)}', space=vmem, size = 0x12000, scoped, tag = 'internal scratch']
  #allocation2 [shape = 'f32[64,128]{1,0:T(8,128)}', space=vmem, size = 0x8000, scoped, tag = 'scratch operand']
  #allocation3 [shape = 'f32[64,128]{1,0:T(8,128)}', space=vmem, size = 0x8000, scoped, tag = 'scratch operand']
  %s0 = inlined_call_operand.hbm [shape: f32[8,16,64], index: 0, kind: input, shape index: {}]
  %s1 = inlined_call_operand.vmem [shape: f32[16,8], index: 1, kind: input, shape index: {}]
  %s2 = inlined_call_operand.vmem [shape: f32[16,128], index: 2, kind: input, shape index: {}]
  %s3 = inlined_call_operand.hbm [shape: f32[64,256], index: 3, kind: input, shape index: {}]
  %s4 = inlined_call_operand.hbm [shape: f32[128,128], index: 4, kind: input, shape index: {}]
  %s5 = inlined_call_operand.hbm [shape: f32[8,16,128], index: 5, kind: output, shape index: {0}]
  %s6 = inlined_call_operand.hbm [shape: f32[16,128], index: 6, kind: output, shape index: {1}]
  %7 = xla_tuple %s5, %s6
  %s8 = sld [smem:[#allocation0]]
  $region73: #{tpu_custom_call.1} parent=0
    _
  %s10 = ssub.s32 1, %s8
  %s11 = scalar_select 0, %s10, %s8
  $region1: #{tpu_custom_call.1} parent=0
    #allocation4 [shape = 'u8[65536]{0}', space=vmem, size = 0x10000, scoped, tag = 'input window, operand 0']
    #allocation5 [shape = 's32[2]{0}', space=sflag, size = 0x8, scoped, tag = 'scoped memory for tpu_custom_call.1']
    #allocation6 [shape = 's32[2]{0}', space=sflag, size = 0x8, scoped, tag = 'scoped memory for tpu_custom_call.1']
    #allocation7 [shape = 'u8[65536]{0}', space=vmem, size = 0x10000, scoped, tag = 'input window, operand 3, single buffered']
    #allocation8 [shape = 's32[1]{0}', space=sflag, size = 0x4, scoped, tag = 'scoped memory for tpu_custom_call.1']
    #allocation9 [shape = 'u8[65536]{0}', space=vmem, size = 0x10000, scoped, tag = 'input window, operand 4, single buffered']
    #allocation10 [shape = 'u8[65536]{0}', space=vmem, size = 0x10000, scoped, tag = 'output window, operand 0']
    #allocation11 [shape = 'u8[8192]{0}', space=vmem, size = 0x2000, scoped, tag = 'output window, operand 1']
    #allocation12 [shape = 's32[2]{0}', space=sflag, size = 0x8, scoped, tag = 'scoped memory for tpu_custom_call.1']
    %12 = vsyncpa [#allocation5], 0
    %s13 = scalar_lea.sflag [#allocation5], 1
    %14 = vsyncpa %s13, 0
    %15 = vsyncpa [#allocation8], 0
    %16 = vsyncpa [#allocation6], 0
    %s17 = scalar_lea.sflag [#allocation6], 1
    %18 = vsyncpa %s17, 0
    %19 = vsyncpa [#allocation12], 0
    %s20 = scalar_lea.sflag [#allocation12], 1
    %21 = vsyncpa %s20, 0
    loop: start=0, step=1, limit=4
    $region2: #{tpu_custom_call.1} parent=1 // loop_pre_header
      _
    $region3: #{tpu_custom_call.1} parent=1 // loop_header
      %s23 = sphi 0, %s27
      %p24 = scmp.ge.s32.totalorder %s23, 4
      %s33 = sphi 0, %s35
      %s36 = sphi 0, %s33
      %s37 = sphi 0, %s36
      %s53 = sphi 0, %s37
      %s59 = sphi 0, %s61
      %s62 = sphi 0, %s59
      %s63 = sphi 0, %s62
      %s79 = sphi 0, %s63
      %s85 = sphi 0, %s87
      %s88 = sphi 0, %s85
      %s89 = sphi 0, %s88
      %s105 = sphi 0, %s89
      %s109 = sphi 0, %s109
      %s111 = sphi 0, %s109
      %s112 = sphi 0, %s111
      %s126 = sphi 0, %s112
      %s130 = sphi 0, %s130
      %s132 = sphi 0, %s130
      %s133 = sphi 0, %s132
      %s147 = sphi 0, %s133
      %s153 = sphi 0, %s155
      %s156 = sphi 0, %s153
      %s157 = sphi 0, %s156
      %s173 = sphi 0, %s157
      %s179 = sphi 0, %s181
      %s182 = sphi 0, %s179
      %s183 = sphi 0, %s182
      %s199 = sphi 0, %s183
    $region4: #{tpu_custom_call.1} parent=1 // loop_header_branch
      %26 = sbr.rel (%p24) target = $region8
    $region5: #{tpu_custom_call.1} parent=1 // loop_body
      %s28 = ssub.s32 %s23, 1
      %s29 = ssub.s32 %s23, 2
      %s30 = sadd.s32 %s23, 1
      %s31 = ssub.s32 %s23, %s30
      %p32 = scmp.eq.s32.totalorder %s31, 0
      %s34 = sadd.s32 %s33, 1
      %s35 = scalar_select %p32, %s33, %s34
      %p38 = pneg %p32
      %p39 = scmp.eq.s32.totalorder %s23, 1
      %p40 = por %p38, %p39
      %p41 = scmp.ne.s32.totalorder %s33, %s36
      %p42 = scmp.eq.s32.totalorder %s23, 0
      %p43 = por %p41, %p42
      %p44 = scmp.ne.s32.totalorder %s33, %s36
      %p45 = scmp.eq.s32.totalorder %s28, 1
      %p46 = por %p44, %p45
      %p47 = scmp.ne.s32.totalorder %s36, %s37
      %p48 = scmp.eq.s32.totalorder %s28, 0
      %p49 = por %p47, %p48
      %p50 = scmp.ne.s32.totalorder %s36, %s37
      %p51 = scmp.eq.s32.totalorder %s29, 1
      %p52 = por %p50, %p51
      %p54 = scmp.ne.s32.totalorder %s37, %s53
      %p55 = scmp.eq.s32.totalorder %s29, 0
      %p56 = por %p54, %p55
      %s57 = ssub.s32 %s23, %s30
      %p58 = scmp.eq.s32.totalorder %s57, 0
      %s60 = sadd.s32 %s59, 1
      %s61 = scalar_select %p58, %s59, %s60
      %p64 = pneg %p58
      %p65 = scmp.eq.s32.totalorder %s23, 1
      %p66 = por %p64, %p65
      %p67 = scmp.ne.s32.totalorder %s59, %s62
      %p68 = scmp.eq.s32.totalorder %s23, 0
      %p69 = por %p67, %p68
      %p70 = scmp.ne.s32.totalorder %s59, %s62
      %p71 = scmp.eq.s32.totalorder %s28, 1
      %p72 = por %p70, %p71
      %p73 = scmp.ne.s32.totalorder %s62, %s63
      %p74 = scmp.eq.s32.totalorder %s28, 0
      %p75 = por %p73, %p74
      %p76 = scmp.ne.s32.totalorder %s62, %s63
      %p77 = scmp.eq.s32.totalorder %s29, 1
      %p78 = por %p76, %p77
      %p80 = scmp.ne.s32.totalorder %s63, %s79
      %p81 = scmp.eq.s32.totalorder %s29, 0
      %p82 = por %p80, %p81
      %s83 = ssub.s32 %s23, %s30
      %p84 = scmp.eq.s32.totalorder %s83, 0
      %s86 = sadd.s32 %s85, 1
      %s87 = scalar_select %p84, %s85, %s86
      %p90 = pneg %p84
      %p91 = scmp.eq.s32.totalorder %s23, 1
      %p92 = por %p90, %p91
      %p93 = scmp.ne.s32.totalorder %s85, %s88
      %p94 = scmp.eq.s32.totalorder %s23, 0
      %p95 = por %p93, %p94
      %p96 = scmp.ne.s32.totalorder %s85, %s88
      %p97 = scmp.eq.s32.totalorder %s28, 1
      %p98 = por %p96, %p97
      %p99 = scmp.ne.s32.totalorder %s88, %s89
      %p100 = scmp.eq.s32.totalorder %s28, 0
      %p101 = por %p99, %p100
      %p102 = scmp.ne.s32.totalorder %s88, %s89
      %p103 = scmp.eq.s32.totalorder %s29, 1
      %p104 = por %p102, %p103
      %p106 = scmp.ne.s32.totalorder %s89, %s105
      %p107 = scmp.eq.s32.totalorder %s29, 0
      %p108 = por %p106, %p107
      %s110 = sadd.s32 %s109, 1
      %p113 = scmp.eq.s32.totalorder %s23, 1
      %p114 = scmp.ne.s32.totalorder %s109, %s111
      %p115 = scmp.eq.s32.totalorder %s23, 0
      %p116 = por %p114, %p115
      %p117 = scmp.ne.s32.totalorder %s109, %s111
      %p118 = scmp.eq.s32.totalorder %s28, 1
      %p119 = por %p117, %p118
      %p120 = scmp.ne.s32.totalorder %s111, %s112
      %p121 = scmp.eq.s32.totalorder %s28, 0
      %p122 = por %p120, %p121
      %p123 = scmp.ne.s32.totalorder %s111, %s112
      %p124 = scmp.eq.s32.totalorder %s29, 1
      %p125 = por %p123, %p124
      %p127 = scmp.ne.s32.totalorder %s112, %s126
      %p128 = scmp.eq.s32.totalorder %s29, 0
      %p129 = por %p127, %p128
      %s131 = sadd.s32 %s130, 1
      %p134 = scmp.eq.s32.totalorder %s23, 1
      %p135 = scmp.ne.s32.totalorder %s130, %s132
      %p136 = scmp.eq.s32.totalorder %s23, 0
      %p137 = por %p135, %p136
      %p138 = scmp.ne.s32.totalorder %s130, %s132
      %p139 = scmp.eq.s32.totalorder %s28, 1
      %p140 = por %p138, %p139
      %p141 = scmp.ne.s32.totalorder %s132, %s133
      %p142 = scmp.eq.s32.totalorder %s28, 0
      %p143 = por %p141, %p142
      %p144 = scmp.ne.s32.totalorder %s132, %s133
      %p145 = scmp.eq.s32.totalorder %s29, 1
      %p146 = por %p144, %p145
      %p148 = scmp.ne.s32.totalorder %s133, %s147
      %p149 = scmp.eq.s32.totalorder %s29, 0
      %p150 = por %p148, %p149
      %s151 = ssub.s32 %s23, %s30
      %p152 = scmp.eq.s32.totalorder %s151, 0
      %s154 = sadd.s32 %s153, 1
      %s155 = scalar_select %p152, %s153, %s154
      %p158 = pneg %p152
      %p159 = scmp.eq.s32.totalorder %s23, 1
      %p160 = por %p158, %p159
      %p161 = scmp.ne.s32.totalorder %s153, %s156
      %p162 = scmp.eq.s32.totalorder %s23, 0
      %p163 = por %p161, %p162
      %p164 = scmp.ne.s32.totalorder %s153, %s156
      %p165 = scmp.eq.s32.totalorder %s28, 1
      %p166 = por %p164, %p165
      %p167 = scmp.ne.s32.totalorder %s156, %s157
      %p168 = scmp.eq.s32.totalorder %s28, 0
      %p169 = por %p167, %p168
      %p170 = scmp.ne.s32.totalorder %s156, %s157
      %p171 = scmp.eq.s32.totalorder %s29, 1
      %p172 = por %p170, %p171
      %p174 = scmp.ne.s32.totalorder %s157, %s173
      %p175 = scmp.eq.s32.totalorder %s29, 0
      %p176 = por %p174, %p175
      %s177 = ssub.s32 %s23, %s30
      %p178 = scmp.eq.s32.totalorder %s177, 0
      %s180 = sadd.s32 %s179, 1
      %s181 = scalar_select %p178, %s179, %s180
      %p184 = pneg %p178
      %p185 = scmp.eq.s32.totalorder %s23, 1
      %p186 = por %p184, %p185
      %p187 = scmp.ne.s32.totalorder %s179, %s182
      %p188 = scmp.eq.s32.totalorder %s23, 0
      %p189 = por %p187, %p188
      %p190 = scmp.ne.s32.totalorder %s179, %s182
      %p191 = scmp.eq.s32.totalorder %s28, 1
      %p192 = por %p190, %p191
      %p193 = scmp.ne.s32.totalorder %s182, %s183
      %p194 = scmp.eq.s32.totalorder %s28, 0
      %p195 = por %p193, %p194
      %p196 = scmp.ne.s32.totalorder %s182, %s183
      %p197 = scmp.eq.s32.totalorder %s29, 1
      %p198 = por %p196, %p197
      %p200 = scmp.ne.s32.totalorder %s183, %s199
      %p201 = scmp.eq.s32.totalorder %s29, 0
      %p202 = por %p200, %p201
      %p203 = scmp.le.s32.totalorder 1, %s23
      %p204 = scmp.lt.s32.totalorder %s23, 3
      %p205 = pnand %p203, %p204
      %p206 = pneg %p205
      // Predicated region
      $region9: #{tpu_custom_call.1} parent=5 // pred_check
        _
      $region10: #{tpu_custom_call.1} parent=5 // pred_check_branch
        %208 = sbr.rel (%p205) target = $region12
      $region11: #{tpu_custom_call.1} parent=5 // pred_region
        %s209 = ssub.s32 %s23, 1
        // Predicated region
        $region13: #{tpu_custom_call.1} parent=11 // pred_check
          %p210 = pneg %p122
        $region14: #{tpu_custom_call.1} parent=11 // pred_check_branch
          %212 = sbr.rel (%p210) target = $region16
        $region15: #{tpu_custom_call.1} parent=11 // pred_region
          %s214 = ssub.s32 2048, 2048
          %215 = vsyncadd [#allocation8], %s214
          %s216 = sshll.u32 [#allocation7], 4
          %s217 = int_to_ptr.vmem [resolvable:$true] %s216
          %222 = dma.hbm_to_vmem [thread:$0]  %s3, 2048, %s217, [#allocation8], 256, 256, 16
        $region16: #{tpu_custom_call.1} parent=11 // pred_fallthru
          _
        // Predicated region
        $region17: #{tpu_custom_call.1} parent=11 // pred_check
          %p223 = pneg %p143
        $region18: #{tpu_custom_call.1} parent=11 // pred_check_branch
          %225 = sbr.rel (%p223) target = $region20
        $region19: #{tpu_custom_call.1} parent=11 // pred_region
          %s227 = ssub.s32 2048, 2048
          %228 = vsyncadd [#allocation8], %s227
          %s229 = sshll.u32 [#allocation9], 4
          %s230 = int_to_ptr.vmem [resolvable:$true] %s229
          %235 = dma.hbm_to_vmem [thread:$0]  %s4, 2048, %s230, [#allocation8], 128, 128, 8
        $region20: #{tpu_custom_call.1} parent=11 // pred_fallthru
          _
      $region12: #{tpu_custom_call.1} parent=5 // pred_fallthru
        _
      %p236 = scmp.lt.s32.totalorder %s23, 2
      // Predicated region
      $region21: #{tpu_custom_call.1} parent=5 // pred_check
        %p237 = pneg %p236
      $region22: #{tpu_custom_call.1} parent=5 // pred_check_branch
        %239 = sbr.rel (%p237) target = $region24
      $region23: #{tpu_custom_call.1} parent=5 // pred_region
        // Predicated region
        $region25: #{tpu_custom_call.1} parent=23 // pred_check
          %p240 = pneg %p43
        $region26: #{tpu_custom_call.1} parent=23 // pred_check_branch
          %242 = sbr.rel (%p240) target = $region28
        $region27: #{tpu_custom_call.1} parent=23 // pred_region
          %s243 = sand.u32 %s33, 1
          %s244 = scalar_lea.sflag [#allocation5], %s243
          %s245 = sand.u32 %s33, 1
          %s246 = smul.addr %s245, 64
          %s247 = scalar_lea.vmem [#allocation4], %s246
          %s249 = ssub.s32 1024, 1024
          %250 = vsyncadd %s244, %s249
          %s251 = smul.addr %s23, 128
          %s252 = scalar_lea.hbm %s0, %s251
          %s253 = sshll.u32 %s247, 4
          %s254 = int_to_ptr.vmem [resolvable:$true] %s253
          %259 = dma.hbm_to_vmem [thread:$0]  %s252, 1024, %s254, %s244, 256, 128, 8
        $region28: #{tpu_custom_call.1} parent=23 // pred_fallthru
          _
        // Predicated region
        $region29: #{tpu_custom_call.1} parent=23 // pred_check
          %p260 = pneg %p69
        $region30: #{tpu_custom_call.1} parent=23 // pred_check_branch
          %262 = sbr.rel (%p260) target = $region32
        $region31: #{tpu_custom_call.1} parent=23 // pred_region
          %p263 = scmp.lt.s32.totalorder %s23, 1
          %s264 = scalar_select %p263, %s23, 1
          %s265 = smul.addr %s264, 8
          %s266 = scalar_lea.vmem %s1, %s265
        $region32: #{tpu_custom_call.1} parent=23 // pred_fallthru
          _
        // Predicated region
        $region33: #{tpu_custom_call.1} parent=23 // pred_check
          %p267 = pneg %p95
        $region34: #{tpu_custom_call.1} parent=23 // pred_check_branch
          %269 = sbr.rel (%p267) target = $region36
        $region35: #{tpu_custom_call.1} parent=23 // pred_region
          %p270 = scmp.lt.s32.totalorder %s23, 1
          %s271 = scalar_select %p270, %s23, 1
          %s272 = smul.addr %s271, 8
          %s273 = scalar_lea.vmem %s2, %s272
        $region36: #{tpu_custom_call.1} parent=23 // pred_fallthru
          _
      $region24: #{tpu_custom_call.1} parent=5 // pred_fallthru
        _
      %p274 = scmp.le.s32.totalorder 1, %s23
      %p275 = scmp.lt.s32.totalorder %s23, 3
      %p276 = pnand %p274, %p275
      %p277 = pneg %p276
      // Predicated region
      $region37: #{tpu_custom_call.1} parent=5 // pred_check
        _
      $region38: #{tpu_custom_call.1} parent=5 // pred_check_branch
        %279 = sbr.rel (%p276) target = $region40
      $region39: #{tpu_custom_call.1} parent=5 // pred_region
        %s280 = ssub.s32 %s23, 1
        %s281 = sand.u32 %s36, 1
        %s282 = scalar_lea.sflag [#allocation5], %s281
        %s283 = sand.u32 %s36, 1
        %s284 = smul.addr %s283, 64
        %s285 = scalar_lea.vmem [#allocation4], %s284
        // Predicated region
        $region41: #{tpu_custom_call.1} parent=39 // pred_check
          %p286 = pneg %p49
        $region42: #{tpu_custom_call.1} parent=39 // pred_check_branch
          %288 = sbr.rel (%p286) target = $region44
        $region43: #{tpu_custom_call.1} parent=39 // pred_region
          %289 = dma.done %s282, 1024
        $region44: #{tpu_custom_call.1} parent=39 // pred_fallthru
          _
        // Predicated region
        $region45: #{tpu_custom_call.1} parent=39 // pred_check
          %p290 = pneg %p122
        $region46: #{tpu_custom_call.1} parent=39 // pred_check_branch
          %292 = sbr.rel (%p290) target = $region48
        $region47: #{tpu_custom_call.1} parent=39 // pred_region
          %293 = dma.done [#allocation8], 2048
        $region48: #{tpu_custom_call.1} parent=39 // pred_fallthru
          _
        // Predicated region
        $region49: #{tpu_custom_call.1} parent=39 // pred_check
          %p294 = pneg %p143
        $region50: #{tpu_custom_call.1} parent=39 // pred_check_branch
          %296 = sbr.rel (%p294) target = $region52
        $region51: #{tpu_custom_call.1} parent=39 // pred_region
          %297 = dma.done [#allocation8], 2048
        $region52: #{tpu_custom_call.1} parent=39 // pred_fallthru
          _
        %s298 = sand.u32 %s36, 1
        %s299 = scalar_lea.sflag [#allocation5], %s298
        %s300 = sand.u32 %s36, 1
        %s301 = smul.addr %s300, 64
        %s302 = scalar_lea.vmem [#allocation4], %s301
        %p303 = pneg %p49
        %p304 = pneg %p46
        %p305 = scmp.lt.s32.totalorder %s28, 1
        %s306 = scalar_select %p305, %s28, 1
        %s307 = smul.addr %s306, 8
        %s308 = scalar_lea.vmem %s1, %s307
        %p309 = pneg %p75
        %p310 = pneg %p72
        %p311 = scmp.lt.s32.totalorder %s28, 1
        %s312 = scalar_select %p311, %s28, 1
        %s313 = smul.addr %s312, 8
        %s314 = scalar_lea.vmem %s2, %s313
        %p315 = pneg %p101
        %p316 = pneg %p98
        %p317 = pneg %p122
        %p318 = pneg %p119
        %p319 = pneg %p143
        %p320 = pneg %p140
        %p321 = pneg %p169
        %p322 = pneg %p166
        %s323 = sand.u32 %s156, 1
        %s324 = scalar_lea.sflag [#allocation6], %s323
        %s325 = sand.u32 %s156, 1
        %s326 = smul.addr %s325, 64
        %s327 = scalar_lea.vmem [#allocation10], %s326
        %p328 = pneg %p195
        %p329 = pneg %p192
        %s330 = sand.u32 %s182, 1
        %s331 = scalar_lea.sflag [#allocation12], %s330
        %s332 = sand.u32 %s182, 1
        %s333 = smul.addr %s332, 8
        %s334 = scalar_lea.vmem [#allocation11], %s333
        %p335 = scmp.lt.s32.totalorder %s28, 1
        %s336 = scalar_select %p335, %s28, 1
        %s337 = smul.addr %s336, 8
        %s338 = scalar_lea.vmem %s1, %s337
        %p339 = scmp.lt.s32.totalorder %s28, 1
        %s340 = scalar_select %p339, %s28, 1
        %s341 = smul.addr %s340, 8
        %s342 = scalar_lea.vmem %s2, %s341
        %v343 = vld [vmem:[%s285] sm:$0xff]
        %v344 = vld [vmem:[%s285 + $0x8] sm:$0xff]
        %v345 = vld [vmem:[%s285 + $0x10] sm:$0xff]
        %v346 = vld [vmem:[%s285 + $0x18] sm:$0xff]
        %v347 = vld [vmem:[%s285 + $0x20] sm:$0xff]
        %v348 = vld [vmem:[%s285 + $0x28] sm:$0xff]
        %v349 = vld [vmem:[%s285 + $0x30] sm:$0xff]
        %v350 = vld [vmem:[%s285 + $0x38] sm:$0xff]
        %v351 = vld [vmem:[#allocation7] sm:$0xff]
        %v352 = vld [vmem:[#allocation7 + $0x8] sm:$0xff]
        %v353 = vld [vmem:[#allocation7 + $0x10] sm:$0xff]
        %v354 = vld [vmem:[#allocation7 + $0x18] sm:$0xff]
        %v355 = vld [vmem:[#allocation7 + $0x20] sm:$0xff]
        %v356 = vld [vmem:[#allocation7 + $0x28] sm:$0xff]
        %v357 = vld [vmem:[#allocation7 + $0x30] sm:$0xff]
        %v358 = vld [vmem:[#allocation7 + $0x38] sm:$0xff]
        %v359 = vld [vmem:[#allocation7 + $0x40] sm:$0xff]
        %v360 = vld [vmem:[#allocation7 + $0x48] sm:$0xff]
        %v361 = vld [vmem:[#allocation7 + $0x50] sm:$0xff]
        %v362 = vld [vmem:[#allocation7 + $0x58] sm:$0xff]
        %v363 = vld [vmem:[#allocation7 + $0x60] sm:$0xff]
        %v364 = vld [vmem:[#allocation7 + $0x68] sm:$0xff]
        %v365 = vld [vmem:[#allocation7 + $0x70] sm:$0xff]
        %v366 = vld [vmem:[#allocation7 + $0x78] sm:$0xff]
        %vm367 = vcmask 523264
        %v369 = vsel %vm367, %v343, 0
        %v372 = vsel %vm367, %v344, 0
        %v375 = vsel %vm367, %v345, 0
        %v378 = vsel %vm367, %v346, 0
        %v381 = vsel %vm367, %v347, 0
        %v384 = vsel %vm367, %v348, 0
        %v387 = vsel %vm367, %v349, 0
        %v390 = vsel %vm367, %v350, 0
        %392 = vmatprep.subr.mxu0 %v352
        %393 = vmatpush1.msra.mxu0 %v351
        %394 = vmatprep.subr.mxu0 %v354
        %395 = vmatpush1.msra.mxu0 %v353
        %396 = vmatprep.subr.mxu0 %v356
        %397 = vmatpush1.msra.mxu0 %v355
        %398 = vmatprep.subr.mxu0 %v358
        %399 = vmatpush1.msra.mxu0 %v357
        %400 = vmatprep.subr.mxu0 %v360
        %401 = vmatpush1.msra.mxu0 %v359
        %402 = vmatprep.subr.mxu0 %v362
        %403 = vmatpush1.msra.mxu0 %v361
        %404 = vmatprep.subr.mxu0 %v364
        %405 = vmatpush1.msra.mxu0 %v363
        %406 = vmatprep.subr.mxu0 %v366
        %407 = vmatpush1.msra.mxu0 %v365
        %408 = vmatprep.subr.mxu0 0.0
        %409 = vmatpush1.msra.mxu0 0.0
        %410 = vmatprep.subr.mxu0 0.0
        %411 = vmatpush1.msra.mxu0 0.0
        %412 = vmatprep.subr.mxu0 0.0
        %413 = vmatpush1.msra.mxu0 0.0
        %414 = vmatprep.subr.mxu0 0.0
        %415 = vmatpush1.msra.mxu0 0.0
        %416 = vmatprep.subr.mxu0 0.0
        %417 = vmatpush1.msra.mxu0 0.0
        %418 = vmatprep.subr.mxu0 0.0
        %419 = vmatpush1.msra.mxu0 0.0
        %420 = vmatprep.subr.mxu0 0.0
        %421 = vmatpush1.msra.mxu0 0.0
        %422 = vmatprep.subr.mxu0 0.0
        %423 = vmatpush1.msra.mxu0 0.0
        %424 = vmatprep.subr.mxu0 0.0
        %425 = vmatpush1.msra.mxu0 0.0
        %426 = vmatprep.subr.mxu0 0.0
        %427 = vmatpush1.msra.mxu0 0.0
        %428 = vmatprep.subr.mxu0 0.0
        %429 = vmatpush1.msra.mxu0 0.0
        %430 = vmatprep.subr.mxu0 0.0
        %431 = vmatpush1.msra.mxu0 0.0
        %432 = vmatprep.subr.mxu0 0.0
        %433 = vmatpush1.msra.mxu0 0.0
        %434 = vmatprep.subr.mxu0 0.0
        %435 = vmatpush1.msra.mxu0 0.0
        %436 = vmatprep.subr.mxu0 0.0
        %437 = vmatpush1.msra.mxu0 0.0
        %438 = vmatprep.subr.mxu0 0.0
        %439 = vmatpush1.msra.mxu0 0.0
        %440 = vmatprep.subr.mxu0 0.0
        %441 = vmatpush1.msra.mxu0 0.0
        %442 = vmatprep.subr.mxu0 0.0
        %443 = vmatpush1.msra.mxu0 0.0
        %444 = vmatprep.subr.mxu0 0.0
        %445 = vmatpush1.msra.mxu0 0.0
        %446 = vmatprep.subr.mxu0 0.0
        %447 = vmatpush1.msra.mxu0 0.0
        %448 = vmatprep.subr.mxu0 0.0
        %449 = vmatpush1.msra.mxu0 0.0
        %450 = vmatprep.subr.mxu0 0.0
        %451 = vmatpush1.msra.mxu0 0.0
        %452 = vmatprep.subr.mxu0 0.0
        %453 = vmatpush1.msra.mxu0 0.0
        %454 = vmatprep.subr.mxu0 0.0
        %455 = vmatpush1.msra.mxu0 0.0
        %456 = vmatprep.mubr.f32.mxu0 0.0
        %457 = vmatmul.mubr.f32.gmra.mrb[0].mxu0 %v369
        %v458 = vpop.f32.mrb[0].mxu0
        %v459 = vadd.f32 0.0, %v458
        %v460 = vpop.f32.mrb[0].mxu0
        %v461 = vadd.f32 0.0, %v460
        %462 = vmatprep.mubr.f32.mxu0 0.0
        %463 = vmatmul.mubr.f32.gmra.mrb[0].mxu0 %v372
        %v464 = vpop.f32.mrb[0].mxu0
        %v465 = vadd.f32 0.0, %v464
        %v466 = vpop.f32.mrb[0].mxu0
        %v467 = vadd.f32 0.0, %v466
        %468 = vmatprep.mubr.f32.mxu0 0.0
        %469 = vmatmul.mubr.f32.gmra.mrb[0].mxu0 %v375
        %v470 = vpop.f32.mrb[0].mxu0
        %v471 = vadd.f32 0.0, %v470
        %v472 = vpop.f32.mrb[0].mxu0
        %v473 = vadd.f32 0.0, %v472
        %474 = vmatprep.mubr.f32.mxu0 0.0
        %475 = vmatmul.mubr.f32.gmra.mrb[0].mxu0 %v378
        %v476 = vpop.f32.mrb[0].mxu0
        %v477 = vadd.f32 0.0, %v476
        %v478 = vpop.f32.mrb[0].mxu0
        %v479 = vadd.f32 0.0, %v478
        %480 = vmatprep.mubr.f32.mxu0 0.0
        %481 = vmatmul.mubr.f32.gmra.mrb[0].mxu0 %v381
        %v482 = vpop.f32.mrb[0].mxu0
        %v483 = vadd.f32 0.0, %v482
        %v484 = vpop.f32.mrb[0].mxu0
        %v485 = vadd.f32 0.0, %v484
        %486 = vmatprep.mubr.f32.mxu0 0.0
        %487 = vmatmul.mubr.f32.gmra.mrb[0].mxu0 %v384
        %v488 = vpop.f32.mrb[0].mxu0
        %v489 = vadd.f32 0.0, %v488
        %v490 = vpop.f32.mrb[0].mxu0
        %v491 = vadd.f32 0.0, %v490
        %492 = vmatprep.mubr.f32.mxu0 0.0
        %493 = vmatmul.mubr.f32.gmra.mrb[0].mxu0 %v387
        %v494 = vpop.f32.mrb[0].mxu0
        %v495 = vadd.f32 0.0, %v494
        %v496 = vpop.f32.mrb[0].mxu0
        %v497 = vadd.f32 0.0, %v496
        %498 = vmatprep.mubr.f32.mxu0 0.0
        %499 = vmatmul.mubr.f32.gmra.mrb[0].mxu0 %v390
        %v500 = vpop.f32.mrb[0].mxu0
        %v501 = vadd.f32 0.0, %v500
        %v502 = vpop.f32.mrb[0].mxu0
        %v503 = vadd.f32 0.0, %v502
        %504 = vdwg.mxu0
        %v505 = vmax.f32 %v461, 0.0
        %v506 = vmax.f32 %v467, 0.0
        %v507 = vmax.f32 %v473, 0.0
        %v508 = vmax.f32 %v479, 0.0
        %v509 = vmax.f32 %v485, 0.0
        %v510 = vmax.f32 %v491, 0.0
        %v511 = vmax.f32 %v497, 0.0
        %v512 = vmax.f32 %v503, 0.0
        %vm513 = vcmp.ne.f32.partialorder %v461, %v461
        %vm514 = vcmp.ne.f32.partialorder %v467, %v467
        %vm515 = vcmp.ne.f32.partialorder %v473, %v473
        %vm516 = vcmp.ne.f32.partialorder %v479, %v479
        %vm517 = vcmp.ne.f32.partialorder %v485, %v485
        %vm518 = vcmp.ne.f32.partialorder %v491, %v491
        %vm519 = vcmp.ne.f32.partialorder %v497, %v497
        %vm520 = vcmp.ne.f32.partialorder %v503, %v503
        %v521 = vadd.f32 %v461, 0.0
        %v522 = vadd.f32 %v467, 0.0
        %v523 = vadd.f32 %v473, 0.0
        %v524 = vadd.f32 %v479, 0.0
        %v525 = vadd.f32 %v485, 0.0
        %v526 = vadd.f32 %v491, 0.0
        %v527 = vadd.f32 %v497, 0.0
        %v528 = vadd.f32 %v503, 0.0
        %v529 = vand.u32 2147483647, %v461
        %v530 = vand.u32 2147483647, %v467
        %v531 = vand.u32 2147483647, %v473
        %v532 = vand.u32 2147483647, %v479
        %v533 = vand.u32 2147483647, %v485
        %v534 = vand.u32 2147483647, %v491
        %v535 = vand.u32 2147483647, %v497
        %v536 = vand.u32 2147483647, %v503
        %v537 = vsub.f32 0.0, %v529
        %v538 = vsub.f32 0.0, %v530
        %v539 = vsub.f32 0.0, %v531
        %v540 = vsub.f32 0.0, %v532
        %v541 = vsub.f32 0.0, %v533
        %v542 = vsub.f32 0.0, %v534
        %v543 = vsub.f32 0.0, %v535
        %v544 = vsub.f32 0.0, %v536
        %v545 = vmul.f32 %v537, 1.442695
        %v546 = vpow.pop %v545
        %v547 = vmul.f32 %v538, 1.442695
        %v548 = vpow.pop %v547
        %v549 = vmul.f32 %v539, 1.442695
        %v550 = vpow.pop %v549
        %v551 = vmul.f32 %v540, 1.442695
        %v552 = vpow.pop %v551
        %v553 = vmul.f32 %v541, 1.442695
        %v554 = vpow.pop %v553
        %v555 = vmul.f32 %v542, 1.442695
        %v556 = vpow.pop %v555
        %v557 = vmul.f32 %v543, 1.442695
        %v558 = vpow.pop %v557
        %v559 = vmul.f32 %v544, 1.442695
        %v560 = vpow.pop %v559
        %v561 = vadd.f32 %v546, 1.0
        %v562 = vlog2.pop %v561
        %v563 = vmul.f32 %v562, 0.6931472
        %v564 = vmul.f32 -0.5, %v546
        %v565 = vadd.f32 %v564, 1.0
        %v566 = vmul.f32 %v565, %v546
        %v567 = vand.u32 2147483647, %v546
        %vm568 = vcmp.lt.f32.partialorder %v567, 0.0004427343
        %v569 = vsel %vm568, %v566, %v563
        %v570 = vadd.f32 %v548, 1.0
        %v571 = vlog2.pop %v570
        %v572 = vmul.f32 %v571, 0.6931472
        %v573 = vmul.f32 -0.5, %v548
        %v574 = vadd.f32 %v573, 1.0
        %v575 = vmul.f32 %v574, %v548
        %v576 = vand.u32 2147483647, %v548
        %vm577 = vcmp.lt.f32.partialorder %v576, 0.0004427343
        %v578 = vsel %vm577, %v575, %v572
        %v579 = vadd.f32 %v550, 1.0
        %v580 = vlog2.pop %v579
        %v581 = vmul.f32 %v580, 0.6931472
        %v582 = vmul.f32 -0.5, %v550
        %v583 = vadd.f32 %v582, 1.0
        %v584 = vmul.f32 %v583, %v550
        %v585 = vand.u32 2147483647, %v550
        %vm586 = vcmp.lt.f32.partialorder %v585, 0.0004427343
        %v587 = vsel %vm586, %v584, %v581
        %v588 = vadd.f32 %v552, 1.0
        %v589 = vlog2.pop %v588
        %v590 = vmul.f32 %v589, 0.6931472
        %v591 = vmul.f32 -0.5, %v552
        %v592 = vadd.f32 %v591, 1.0
        %v593 = vmul.f32 %v592, %v552
        %v594 = vand.u32 2147483647, %v552
        %vm595 = vcmp.lt.f32.partialorder %v594, 0.0004427343
        %v596 = vsel %vm595, %v593, %v590
        %v597 = vadd.f32 %v554, 1.0
        %v598 = vlog2.pop %v597
        %v599 = vmul.f32 %v598, 0.6931472
        %v600 = vmul.f32 -0.5, %v554
        %v601 = vadd.f32 %v600, 1.0
        %v602 = vmul.f32 %v601, %v554
        %v603 = vand.u32 2147483647, %v554
        %vm604 = vcmp.lt.f32.partialorder %v603, 0.0004427343
        %v605 = vsel %vm604, %v602, %v599
        %v606 = vadd.f32 %v556, 1.0
        %v607 = vlog2.pop %v606
        %v608 = vmul.f32 %v607, 0.6931472
        %v609 = vmul.f32 -0.5, %v556
        %v610 = vadd.f32 %v609, 1.0
        %v611 = vmul.f32 %v610, %v556
        %v612 = vand.u32 2147483647, %v556
        %vm613 = vcmp.lt.f32.partialorder %v612, 0.0004427343
        %v614 = vsel %vm613, %v611, %v608
        %v615 = vadd.f32 %v558, 1.0
        %v616 = vlog2.pop %v615
        %v617 = vmul.f32 %v616, 0.6931472
        %v618 = vmul.f32 -0.5, %v558
        %v619 = vadd.f32 %v618, 1.0
        %v620 = vmul.f32 %v619, %v558
        %v621 = vand.u32 2147483647, %v558
        %vm622 = vcmp.lt.f32.partialorder %v621, 0.0004427343
        %v623 = vsel %vm622, %v620, %v617
        %v624 = vadd.f32 %v560, 1.0
        %v625 = vlog2.pop %v624
        %v626 = vmul.f32 %v625, 0.6931472
        %v627 = vmul.f32 -0.5, %v560
        %v628 = vadd.f32 %v627, 1.0
        %v629 = vmul.f32 %v628, %v560
        %v630 = vand.u32 2147483647, %v560
        %vm631 = vcmp.lt.f32.partialorder %v630, 0.0004427343
        %v632 = vsel %vm631, %v629, %v626
        %v633 = vadd.f32 %v505, %v569
        %v634 = vadd.f32 %v506, %v578
        %v635 = vadd.f32 %v507, %v587
        %v636 = vadd.f32 %v508, %v596
        %v637 = vadd.f32 %v509, %v605
        %v638 = vadd.f32 %v510, %v614
        %v639 = vadd.f32 %v511, %v623
        %v640 = vadd.f32 %v512, %v632
        %v641 = vsel %vm513, %v521, %v633
        %v642 = vsel %vm514, %v522, %v634
        %v643 = vsel %vm515, %v523, %v635
        %v644 = vsel %vm516, %v524, %v636
        %v645 = vsel %vm517, %v525, %v637
        %v646 = vsel %vm518, %v526, %v638
        %v647 = vsel %vm519, %v527, %v639
        %v648 = vsel %vm520, %v528, %v640
        %v649 = vsub.f32 0.0, %v641
        %v650 = vsub.f32 0.0, %v642
        %v651 = vsub.f32 0.0, %v643
        %v652 = vsub.f32 0.0, %v644
        %v653 = vsub.f32 0.0, %v645
        %v654 = vsub.f32 0.0, %v646
        %v655 = vsub.f32 0.0, %v647
        %v656 = vsub.f32 0.0, %v648
        %v657 = vsub.f32 0.0, %v461
        %v658 = vsub.f32 0.0, %v467
        %v659 = vsub.f32 0.0, %v473
        %v660 = vsub.f32 0.0, %v479
        %v661 = vsub.f32 0.0, %v485
        %v662 = vsub.f32 0.0, %v491
        %v663 = vsub.f32 0.0, %v497
        %v664 = vsub.f32 0.0, %v503
        %v665 = vmax.f32 %v657, 0.0
        %v666 = vmax.f32 %v658, 0.0
        %v667 = vmax.f32 %v659, 0.0
        %v668 = vmax.f32 %v660, 0.0
        %v669 = vmax.f32 %v661, 0.0
        %v670 = vmax.f32 %v662, 0.0
        %v671 = vmax.f32 %v663, 0.0
        %v672 = vmax.f32 %v664, 0.0
        %vm673 = vcmp.ne.f32.partialorder %v657, %v657
        %vm674 = vcmp.ne.f32.partialorder %v658, %v658
        %vm675 = vcmp.ne.f32.partialorder %v659, %v659
        %vm676 = vcmp.ne.f32.partialorder %v660, %v660
        %vm677 = vcmp.ne.f32.partialorder %v661, %v661
        %vm678 = vcmp.ne.f32.partialorder %v662, %v662
        %vm679 = vcmp.ne.f32.partialorder %v663, %v663
        %vm680 = vcmp.ne.f32.partialorder %v664, %v664
        %v681 = vadd.f32 %v657, 0.0
        %v682 = vadd.f32 %v658, 0.0
        %v683 = vadd.f32 %v659, 0.0
        %v684 = vadd.f32 %v660, 0.0
        %v685 = vadd.f32 %v661, 0.0
        %v686 = vadd.f32 %v662, 0.0
        %v687 = vadd.f32 %v663, 0.0
        %v688 = vadd.f32 %v664, 0.0
        %v689 = vand.u32 2147483647, %v657
        %v690 = vand.u32 2147483647, %v658
        %v691 = vand.u32 2147483647, %v659
        %v692 = vand.u32 2147483647, %v660
        %v693 = vand.u32 2147483647, %v661
        %v694 = vand.u32 2147483647, %v662
        %v695 = vand.u32 2147483647, %v663
        %v696 = vand.u32 2147483647, %v664
        %v697 = vsub.f32 0.0, %v689
        %v698 = vsub.f32 0.0, %v690
        %v699 = vsub.f32 0.0, %v691
        %v700 = vsub.f32 0.0, %v692
        %v701 = vsub.f32 0.0, %v693
        %v702 = vsub.f32 0.0, %v694
        %v703 = vsub.f32 0.0, %v695
        %v704 = vsub.f32 0.0, %v696
        %v705 = vmul.f32 %v697, 1.442695
        %v706 = vpow.pop %v705
        %v707 = vmul.f32 %v698, 1.442695
        %v708 = vpow.pop %v707
        %v709 = vmul.f32 %v699, 1.442695
        %v710 = vpow.pop %v709
        %v711 = vmul.f32 %v700, 1.442695
        %v712 = vpow.pop %v711
        %v713 = vmul.f32 %v701, 1.442695
        %v714 = vpow.pop %v713
        %v715 = vmul.f32 %v702, 1.442695
        %v716 = vpow.pop %v715
        %v717 = vmul.f32 %v703, 1.442695
        %v718 = vpow.pop %v717
        %v719 = vmul.f32 %v704, 1.442695
        %v720 = vpow.pop %v719
        %v721 = vadd.f32 %v706, 1.0
        %v722 = vlog2.pop %v721
        %v723 = vmul.f32 %v722, 0.6931472
        %v724 = vmul.f32 -0.5, %v706
        %v725 = vadd.f32 %v724, 1.0
        %v726 = vmul.f32 %v725, %v706
        %v727 = vand.u32 2147483647, %v706
        %vm728 = vcmp.lt.f32.partialorder %v727, 0.0004427343
        %v729 = vsel %vm728, %v726, %v723
        %v730 = vadd.f32 %v708, 1.0
        %v731 = vlog2.pop %v730
        %v732 = vmul.f32 %v731, 0.6931472
        %v733 = vmul.f32 -0.5, %v708
        %v734 = vadd.f32 %v733, 1.0
        %v735 = vmul.f32 %v734, %v708
        %v736 = vand.u32 2147483647, %v708
        %vm737 = vcmp.lt.f32.partialorder %v736, 0.0004427343
        %v738 = vsel %vm737, %v735, %v732
        %v739 = vadd.f32 %v710, 1.0
        %v740 = vlog2.pop %v739
        %v741 = vmul.f32 %v740, 0.6931472
        %v742 = vmul.f32 -0.5, %v710
        %v743 = vadd.f32 %v742, 1.0
        %v744 = vmul.f32 %v743, %v710
        %v745 = vand.u32 2147483647, %v710
        %vm746 = vcmp.lt.f32.partialorder %v745, 0.0004427343
        %v747 = vsel %vm746, %v744, %v741
        %v748 = vadd.f32 %v712, 1.0
        %v749 = vlog2.pop %v748
        %v750 = vmul.f32 %v749, 0.6931472
        %v751 = vmul.f32 -0.5, %v712
        %v752 = vadd.f32 %v751, 1.0
        %v753 = vmul.f32 %v752, %v712
        %v754 = vand.u32 2147483647, %v712
        %vm755 = vcmp.lt.f32.partialorder %v754, 0.0004427343
        %v756 = vsel %vm755, %v753, %v750
        %v757 = vadd.f32 %v714, 1.0
        %v758 = vlog2.pop %v757
        %v759 = vmul.f32 %v758, 0.6931472
        %v760 = vmul.f32 -0.5, %v714
        %v761 = vadd.f32 %v760, 1.0
        %v762 = vmul.f32 %v761, %v714
        %v763 = vand.u32 2147483647, %v714
        %vm764 = vcmp.lt.f32.partialorder %v763, 0.0004427343
        %v765 = vsel %vm764, %v762, %v759
        %v766 = vadd.f32 %v716, 1.0
        %v767 = vlog2.pop %v766
        %v768 = vmul.f32 %v767, 0.6931472
        %v769 = vmul.f32 -0.5, %v716
        %v770 = vadd.f32 %v769, 1.0
        %v771 = vmul.f32 %v770, %v716
        %v772 = vand.u32 2147483647, %v716
        %vm773 = vcmp.lt.f32.partialorder %v772, 0.0004427343
        %v774 = vsel %vm773, %v771, %v768
        %v775 = vadd.f32 %v718, 1.0
        %v776 = vlog2.pop %v775
        %v777 = vmul.f32 %v776, 0.6931472
        %v778 = vmul.f32 -0.5, %v718
        %v779 = vadd.f32 %v778, 1.0
        %v780 = vmul.f32 %v779, %v718
        %v781 = vand.u32 2147483647, %v718
        %vm782 = vcmp.lt.f32.partialorder %v781, 0.0004427343
        %v783 = vsel %vm782, %v780, %v777
        %v784 = vadd.f32 %v720, 1.0
        %v785 = vlog2.pop %v784
        %v786 = vmul.f32 %v785, 0.6931472
        %v787 = vmul.f32 -0.5, %v720
        %v788 = vadd.f32 %v787, 1.0
        %v789 = vmul.f32 %v788, %v720
        %v790 = vand.u32 2147483647, %v720
        %vm791 = vcmp.lt.f32.partialorder %v790, 0.0004427343
        %v792 = vsel %vm791, %v789, %v786
        %v793 = vadd.f32 %v665, %v729
        %v794 = vadd.f32 %v666, %v738
        %v795 = vadd.f32 %v667, %v747
        %v796 = vadd.f32 %v668, %v756
        %v797 = vadd.f32 %v669, %v765
        %v798 = vadd.f32 %v670, %v774
        %v799 = vadd.f32 %v671, %v783
        %v800 = vadd.f32 %v672, %v792
        %v801 = vsel %vm673, %v681, %v793
        %v802 = vsel %vm674, %v682, %v794
        %v803 = vsel %vm675, %v683, %v795
        %v804 = vsel %vm676, %v684, %v796
        %v805 = vsel %vm677, %v685, %v797
        %v806 = vsel %vm678, %v686, %v798
        %v807 = vsel %vm679, %v687, %v799
        %v808 = vsel %vm680, %v688, %v800
        %v809 = vsub.f32 0.0, %v801
        %v810 = vsub.f32 0.0, %v802
        %v811 = vsub.f32 0.0, %v803
        %v812 = vsub.f32 0.0, %v804
        %v813 = vsub.f32 0.0, %v805
        %v814 = vsub.f32 0.0, %v806
        %v815 = vsub.f32 0.0, %v807
        %v816 = vsub.f32 0.0, %v808
        %vm817 = vcmp.ge.f32.partialorder %v459, 0.0
        %vm818 = vcmp.ge.f32.partialorder %v465, 0.0
        %vm819 = vcmp.ge.f32.partialorder %v471, 0.0
        %vm820 = vcmp.ge.f32.partialorder %v477, 0.0
        %vm821 = vcmp.ge.f32.partialorder %v483, 0.0
        %vm822 = vcmp.ge.f32.partialorder %v489, 0.0
        %vm823 = vcmp.ge.f32.partialorder %v495, 0.0
        %vm824 = vcmp.ge.f32.partialorder %v501, 0.0
        %v825 = vmax.f32 %v459, 0.0
        %v826 = vmax.f32 %v465, 0.0
        %v827 = vmax.f32 %v471, 0.0
        %v828 = vmax.f32 %v477, 0.0
        %v829 = vmax.f32 %v483, 0.0
        %v830 = vmax.f32 %v489, 0.0
        %v831 = vmax.f32 %v495, 0.0
        %v832 = vmax.f32 %v501, 0.0
        %v833 = vadd.f32 %v825, 0.5
        %v834 = vadd.f32 %v826, 0.5
        %v835 = vadd.f32 %v827, 0.5
        %v836 = vadd.f32 %v828, 0.5
        %v837 = vadd.f32 %v829, 0.5
        %v838 = vadd.f32 %v830, 0.5
        %v839 = vadd.f32 %v831, 0.5
        %v840 = vadd.f32 %v832, 0.5
        %v841 = vlog2.pop %v833
        %v842 = vmul.f32 %v841, 0.6931472
        %v843 = vlog2.pop %v834
        %v844 = vmul.f32 %v843, 0.6931472
        %v845 = vlog2.pop %v835
        %v846 = vmul.f32 %v845, 0.6931472
        %v847 = vlog2.pop %v836
        %v848 = vmul.f32 %v847, 0.6931472
        %v849 = vlog2.pop %v837
        %v850 = vmul.f32 %v849, 0.6931472
        %v851 = vlog2.pop %v838
        %v852 = vmul.f32 %v851, 0.6931472
        %v853 = vlog2.pop %v839
        %v854 = vmul.f32 %v853, 0.6931472
        %v855 = vlog2.pop %v840
        %v856 = vmul.f32 %v855, 0.6931472
        %v857 = vsub.f32 0.0, %v459
        %v858 = vsub.f32 0.0, %v465
        %v859 = vsub.f32 0.0, %v471
        %v860 = vsub.f32 0.0, %v477
        %v861 = vsub.f32 0.0, %v483
        %v862 = vsub.f32 0.0, %v489
        %v863 = vsub.f32 0.0, %v495
        %v864 = vsub.f32 0.0, %v501
        %v865 = vmax.f32 %v857, 0.0
        %v866 = vmax.f32 %v858, 0.0
        %v867 = vmax.f32 %v859, 0.0
        %v868 = vmax.f32 %v860, 0.0
        %v869 = vmax.f32 %v861, 0.0
        %v870 = vmax.f32 %v862, 0.0
        %v871 = vmax.f32 %v863, 0.0
        %v872 = vmax.f32 %v864, 0.0
        %vm873 = vcmp.ne.f32.partialorder %v857, %v857
        %vm874 = vcmp.ne.f32.partialorder %v858, %v858
        %vm875 = vcmp.ne.f32.partialorder %v859, %v859
        %vm876 = vcmp.ne.f32.partialorder %v860, %v860
        %vm877 = vcmp.ne.f32.partialorder %v861, %v861
        %vm878 = vcmp.ne.f32.partialorder %v862, %v862
        %vm879 = vcmp.ne.f32.partialorder %v863, %v863
        %vm880 = vcmp.ne.f32.partialorder %v864, %v864
        %v881 = vadd.f32 %v857, 0.0
        %v882 = vadd.f32 %v858, 0.0
        %v883 = vadd.f32 %v859, 0.0
        %v884 = vadd.f32 %v860, 0.0
        %v885 = vadd.f32 %v861, 0.0
        %v886 = vadd.f32 %v862, 0.0
        %v887 = vadd.f32 %v863, 0.0
        %v888 = vadd.f32 %v864, 0.0
        %v889 = vand.u32 2147483647, %v857
        %v890 = vand.u32 2147483647, %v858
        %v891 = vand.u32 2147483647, %v859
        %v892 = vand.u32 2147483647, %v860
        %v893 = vand.u32 2147483647, %v861
        %v894 = vand.u32 2147483647, %v862
        %v895 = vand.u32 2147483647, %v863
        %v896 = vand.u32 2147483647, %v864
        %v897 = vsub.f32 0.0, %v889
        %v898 = vsub.f32 0.0, %v890
        %v899 = vsub.f32 0.0, %v891
        %v900 = vsub.f32 0.0, %v892
        %v901 = vsub.f32 0.0, %v893
        %v902 = vsub.f32 0.0, %v894
        %v903 = vsub.f32 0.0, %v895
        %v904 = vsub.f32 0.0, %v896
        %v905 = vmul.f32 %v897, 1.442695
        %v906 = vpow.pop %v905
        %v907 = vmul.f32 %v898, 1.442695
        %v908 = vpow.pop %v907
        %v909 = vmul.f32 %v899, 1.442695
        %v910 = vpow.pop %v909
        %v911 = vmul.f32 %v900, 1.442695
        %v912 = vpow.pop %v911
        %v913 = vmul.f32 %v901, 1.442695
        %v914 = vpow.pop %v913
        %v915 = vmul.f32 %v902, 1.442695
        %v916 = vpow.pop %v915
        %v917 = vmul.f32 %v903, 1.442695
        %v918 = vpow.pop %v917
        %v919 = vmul.f32 %v904, 1.442695
        %v920 = vpow.pop %v919
        %v921 = vadd.f32 %v906, 1.0
        %v922 = vlog2.pop %v921
        %v923 = vmul.f32 %v922, 0.6931472
        %v924 = vmul.f32 -0.5, %v906
        %v925 = vadd.f32 %v924, 1.0
        %v926 = vmul.f32 %v925, %v906
        %v927 = vand.u32 2147483647, %v906
        %vm928 = vcmp.lt.f32.partialorder %v927, 0.0004427343
        %v929 = vsel %vm928, %v926, %v923
        %v930 = vadd.f32 %v908, 1.0
        %v931 = vlog2.pop %v930
        %v932 = vmul.f32 %v931, 0.6931472
        %v933 = vmul.f32 -0.5, %v908
        %v934 = vadd.f32 %v933, 1.0
        %v935 = vmul.f32 %v934, %v908
        %v936 = vand.u32 2147483647, %v908
        %vm937 = vcmp.lt.f32.partialorder %v936, 0.0004427343
        %v938 = vsel %vm937, %v935, %v932
        %v939 = vadd.f32 %v910, 1.0
        %v940 = vlog2.pop %v939
        %v941 = vmul.f32 %v940, 0.6931472
        %v942 = vmul.f32 -0.5, %v910
        %v943 = vadd.f32 %v942, 1.0
        %v944 = vmul.f32 %v943, %v910
        %v945 = vand.u32 2147483647, %v910
        %vm946 = vcmp.lt.f32.partialorder %v945, 0.0004427343
        %v947 = vsel %vm946, %v944, %v941
        %v948 = vadd.f32 %v912, 1.0
        %v949 = vlog2.pop %v948
        %v950 = vmul.f32 %v949, 0.6931472
        %v951 = vmul.f32 -0.5, %v912
        %v952 = vadd.f32 %v951, 1.0
        %v953 = vmul.f32 %v952, %v912
        %v954 = vand.u32 2147483647, %v912
        %vm955 = vcmp.lt.f32.partialorder %v954, 0.0004427343
        %v956 = vsel %vm955, %v953, %v950
        %v957 = vadd.f32 %v914, 1.0
        %v958 = vlog2.pop %v957
        %v959 = vmul.f32 %v958, 0.6931472
        %v960 = vmul.f32 -0.5, %v914
        %v961 = vadd.f32 %v960, 1.0
        %v962 = vmul.f32 %v961, %v914
        %v963 = vand.u32 2147483647, %v914
        %vm964 = vcmp.lt.f32.partialorder %v963, 0.0004427343
        %v965 = vsel %vm964, %v962, %v959
        %v966 = vadd.f32 %v916, 1.0
        %v967 = vlog2.pop %v966
        %v968 = vmul.f32 %v967, 0.6931472
        %v969 = vmul.f32 -0.5, %v916
        %v970 = vadd.f32 %v969, 1.0
        %v971 = vmul.f32 %v970, %v916
        %v972 = vand.u32 2147483647, %v916
        %vm973 = vcmp.lt.f32.partialorder %v972, 0.0004427343
        %v974 = vsel %vm973, %v971, %v968
        %v975 = vadd.f32 %v918, 1.0
        %v976 = vlog2.pop %v975
        %v977 = vmul.f32 %v976, 0.6931472
        %v978 = vmul.f32 -0.5, %v918
        %v979 = vadd.f32 %v978, 1.0
        %v980 = vmul.f32 %v979, %v918
        %v981 = vand.u32 2147483647, %v918
        %vm982 = vcmp.lt.f32.partialorder %v981, 0.0004427343
        %v983 = vsel %vm982, %v980, %v977
        %v984 = vadd.f32 %v920, 1.0
        %v985 = vlog2.pop %v984
        %v986 = vmul.f32 %v985, 0.6931472
        %v987 = vmul.f32 -0.5, %v920
        %v988 = vadd.f32 %v987, 1.0
        %v989 = vmul.f32 %v988, %v920
        %v990 = vand.u32 2147483647, %v920
        %vm991 = vcmp.lt.f32.partialorder %v990, 0.0004427343
        %v992 = vsel %vm991, %v989, %v986
        %v993 = vadd.f32 %v865, %v929
        %v994 = vadd.f32 %v866, %v938
        %v995 = vadd.f32 %v867, %v947
        %v996 = vadd.f32 %v868, %v956
        %v997 = vadd.f32 %v869, %v965
        %v998 = vadd.f32 %v870, %v974
        %v999 = vadd.f32 %v871, %v983
        %v1000 = vadd.f32 %v872, %v992
        %v1001 = vsel %vm873, %v881, %v993
        %v1002 = vsel %vm874, %v882, %v994
        %v1003 = vsel %vm875, %v883, %v995
        %v1004 = vsel %vm876, %v884, %v996
        %v1005 = vsel %vm877, %v885, %v997
        %v1006 = vsel %vm878, %v886, %v998
        %v1007 = vsel %vm879, %v887, %v999
        %v1008 = vsel %vm880, %v888, %v1000
        %v1009 = vsub.f32 0.0, %v1001
        %v1010 = vsub.f32 0.0, %v1002
        %v1011 = vsub.f32 0.0, %v1003
        %v1012 = vsub.f32 0.0, %v1004
        %v1013 = vsub.f32 0.0, %v1005
        %v1014 = vsub.f32 0.0, %v1006
        %v1015 = vsub.f32 0.0, %v1007
        %v1016 = vsub.f32 0.0, %v1008
        %v1017 = vsel %vm817, %v842, %v1009
        %v1018 = vsel %vm818, %v844, %v1010
        %v1019 = vsel %vm819, %v846, %v1011
        %v1020 = vsel %vm820, %v848, %v1012
        %v1021 = vsel %vm821, %v850, %v1013
        %v1022 = vsel %vm822, %v852, %v1014
        %v1023 = vsel %vm823, %v854, %v1015
        %v1024 = vsel %vm824, %v856, %v1016
        %v1025 = vadd.f32 %v809, %v1017
        %v1026 = vadd.f32 %v810, %v1018
        %v1027 = vadd.f32 %v811, %v1019
        %v1028 = vadd.f32 %v812, %v1020
        %v1029 = vadd.f32 %v813, %v1021
        %v1030 = vadd.f32 %v814, %v1022
        %v1031 = vadd.f32 %v815, %v1023
        %v1032 = vadd.f32 %v816, %v1024
        %v1033 = vld [vmem:[%s342] sm:$0xff]
        %v1034 = vlog2.pop %v1033
        %v1035 = vmul.f32 %v1034, 0.6931472
        %v1036 = vld [vmem:[%s338] sm:$0xff]
        %vm1037 = vcmp.gt.f32.partialorder %v1036, 0.5
        %v1038 = vsel %vm1037, 1, 0
        %1039 = vset.pattern.permute.xlu0 0
        %1040 = vperm.xlu0 %1039, %v1038
        %v1041 = vpop.permute.xlu0 %1040
        %vm1042 = vcmp.eq.s32.totalorder %v1041, 1
        %v1043 = vsel %vm1042, 0.0, %v649
        %v1044 = vadd.f32 %v649, -inf
        %v1045 = vmax.f32 %v1044, %v1025
        %v1046 = vsub.f32 %v1044, %v1025
        %vm1047 = vcmp.ne.f32.partialorder %v1046, %v1046
        %v1048 = vadd.f32 %v1044, %v1025
        %v1049 = vand.u32 2147483647, %v1046
        %v1050 = vsub.f32 0.0, %v1049
        %v1051 = vmul.f32 %v1050, 1.442695
        %v1052 = vpow.pop %v1051
        %v1053 = vadd.f32 %v1052, 1.0
        %v1054 = vlog2.pop %v1053
        %v1055 = vmul.f32 %v1054, 0.6931472
        %v1056 = vmul.f32 -0.5, %v1052
        %v1057 = vadd.f32 %v1056, 1.0
        %v1058 = vmul.f32 %v1057, %v1052
        %v1059 = vand.u32 2147483647, %v1052
        %vm1060 = vcmp.lt.f32.partialorder %v1059, 0.0004427343
        %v1061 = vsel %vm1060, %v1058, %v1055
        %v1062 = vadd.f32 %v1045, %v1061
        %v1063 = vsel %vm1047, %v1048, %v1062
        %v1064 = vsel %vm1042, %v1025, %v1063
        %v1065 = vadd.f32 %v1043, %v1035
        %1066 = vst [vmem:[#allocation2] sm:$0xff] %v1065
        %1067 = vst [vmem:[#allocation3] sm:$0xff] %v1064
        %1068 = vset.pattern.permute.xlu0 1
        %1069 = vperm.xlu0 %1068, %v1038
        %v1070 = vpop.permute.xlu0 %1069
        %vm1071 = vcmp.eq.s32.totalorder %v1070, 1
        %v1072 = vsel %vm1071, %v1043, %v650
        %v1073 = vadd.f32 %v650, %v1064
        %v1074 = vmax.f32 %v1073, %v1026
        %v1075 = vsub.f32 %v1073, %v1026
        %vm1076 = vcmp.ne.f32.partialorder %v1075, %v1075
        %v1077 = vadd.f32 %v1073, %v1026
        %v1078 = vand.u32 2147483647, %v1075
        %v1079 = vsub.f32 0.0, %v1078
        %v1080 = vmul.f32 %v1079, 1.442695
        %v1081 = vpow.pop %v1080
        %v1082 = vadd.f32 %v1081, 1.0
        %v1083 = vlog2.pop %v1082
        %v1084 = vmul.f32 %v1083, 0.6931472
        %v1085 = vmul.f32 -0.5, %v1081
        %v1086 = vadd.f32 %v1085, 1.0
        %v1087 = vmul.f32 %v1086, %v1081
        %v1088 = vand.u32 2147483647, %v1081
        %vm1089 = vcmp.lt.f32.partialorder %v1088, 0.0004427343
        %v1090 = vsel %vm1089, %v1087, %v1084
        %v1091 = vadd.f32 %v1074, %v1090
        %v1092 = vsel %vm1076, %v1077, %v1091
        %v1093 = vsel %vm1071, %v1026, %v1092
        %v1094 = vadd.f32 %v1072, %v1035
        %1095 = vst [vmem:[#allocation2 + $0x8] sm:$0xff] %v1094
        %1096 = vst [vmem:[#allocation3 + $0x8] sm:$0xff] %v1093
        %1097 = vset.pattern.permute.xlu0 2
        %1098 = vperm.xlu0 %1097, %v1038
        %v1099 = vpop.permute.xlu0 %1098
        %vm1100 = vcmp.eq.s32.totalorder %v1099, 1
        %v1101 = vsel %vm1100, %v1072, %v651
        %v1102 = vadd.f32 %v651, %v1093
        %v1103 = vmax.f32 %v1102, %v1027
        %v1104 = vsub.f32 %v1102, %v1027
        %vm1105 = vcmp.ne.f32.partialorder %v1104, %v1104
        %v1106 = vadd.f32 %v1102, %v1027
        %v1107 = vand.u32 2147483647, %v1104
        %v1108 = vsub.f32 0.0, %v1107
        %v1109 = vmul.f32 %v1108, 1.442695
        %v1110 = vpow.pop %v1109
        %v1111 = vadd.f32 %v1110, 1.0
        %v1112 = vlog2.pop %v1111
        %v1113 = vmul.f32 %v1112, 0.6931472
        %v1114 = vmul.f32 -0.5, %v1110
        %v1115 = vadd.f32 %v1114, 1.0
        %v1116 = vmul.f32 %v1115, %v1110
        %v1117 = vand.u32 2147483647, %v1110
        %vm1118 = vcmp.lt.f32.partialorder %v1117, 0.0004427343
        %v1119 = vsel %vm1118, %v1116, %v1113
        %v1120 = vadd.f32 %v1103, %v1119
        %v1121 = vsel %vm1105, %v1106, %v1120
        %v1122 = vsel %vm1100, %v1027, %v1121
        %v1123 = vadd.f32 %v1101, %v1035
        %1124 = vst [vmem:[#allocation2 + $0x10] sm:$0xff] %v1123
        %1125 = vst [vmem:[#allocation3 + $0x10] sm:$0xff] %v1122
        %1126 = vset.pattern.permute.xlu0 3
        %1127 = vperm.xlu0 %1126, %v1038
        %v1128 = vpop.permute.xlu0 %1127
        %vm1129 = vcmp.eq.s32.totalorder %v1128, 1
        %v1130 = vsel %vm1129, %v1101, %v652
        %v1131 = vadd.f32 %v652, %v1122
        %v1132 = vmax.f32 %v1131, %v1028
        %v1133 = vsub.f32 %v1131, %v1028
        %vm1134 = vcmp.ne.f32.partialorder %v1133, %v1133
        %v1135 = vadd.f32 %v1131, %v1028
        %v1136 = vand.u32 2147483647, %v1133
        %v1137 = vsub.f32 0.0, %v1136
        %v1138 = vmul.f32 %v1137, 1.442695
        %v1139 = vpow.pop %v1138
        %v1140 = vadd.f32 %v1139, 1.0
        %v1141 = vlog2.pop %v1140
        %v1142 = vmul.f32 %v1141, 0.6931472
        %v1143 = vmul.f32 -0.5, %v1139
        %v1144 = vadd.f32 %v1143, 1.0
        %v1145 = vmul.f32 %v1144, %v1139
        %v1146 = vand.u32 2147483647, %v1139
        %vm1147 = vcmp.lt.f32.partialorder %v1146, 0.0004427343
        %v1148 = vsel %vm1147, %v1145, %v1142
        %v1149 = vadd.f32 %v1132, %v1148
        %v1150 = vsel %vm1134, %v1135, %v1149
        %v1151 = vsel %vm1129, %v1028, %v1150
        %v1152 = vadd.f32 %v1130, %v1035
        %1153 = vst [vmem:[#allocation2 + $0x18] sm:$0xff] %v1152
        %1154 = vst [vmem:[#allocation3 + $0x18] sm:$0xff] %v1151
        %1155 = vset.pattern.permute.xlu0 4
        %1156 = vperm.xlu0 %1155, %v1038
        %v1157 = vpop.permute.xlu0 %1156
        %vm1158 = vcmp.eq.s32.totalorder %v1157, 1
        %v1159 = vsel %vm1158, %v1130, %v653
        %v1160 = vadd.f32 %v653, %v1151
        %v1161 = vmax.f32 %v1160, %v1029
        %v1162 = vsub.f32 %v1160, %v1029
        %vm1163 = vcmp.ne.f32.partialorder %v1162, %v1162
        %v1164 = vadd.f32 %v1160, %v1029
        %v1165 = vand.u32 2147483647, %v1162
        %v1166 = vsub.f32 0.0, %v1165
        %v1167 = vmul.f32 %v1166, 1.442695
        %v1168 = vpow.pop %v1167
        %v1169 = vadd.f32 %v1168, 1.0
        %v1170 = vlog2.pop %v1169
        %v1171 = vmul.f32 %v1170, 0.6931472
        %v1172 = vmul.f32 -0.5, %v1168
        %v1173 = vadd.f32 %v1172, 1.0
        %v1174 = vmul.f32 %v1173, %v1168
        %v1175 = vand.u32 2147483647, %v1168
        %vm1176 = vcmp.lt.f32.partialorder %v1175, 0.0004427343
        %v1177 = vsel %vm1176, %v1174, %v1171
        %v1178 = vadd.f32 %v1161, %v1177
        %v1179 = vsel %vm1163, %v1164, %v1178
        %v1180 = vsel %vm1158, %v1029, %v1179
        %v1181 = vadd.f32 %v1159, %v1035
        %1182 = vst [vmem:[#allocation2 + $0x20] sm:$0xff] %v1181
        %1183 = vst [vmem:[#allocation3 + $0x20] sm:$0xff] %v1180
        %1184 = vset.pattern.permute.xlu0 5
        %1185 = vperm.xlu0 %1184, %v1038
        %v1186 = vpop.permute.xlu0 %1185
        %vm1187 = vcmp.eq.s32.totalorder %v1186, 1
        %v1188 = vsel %vm1187, %v1159, %v654
        %v1189 = vadd.f32 %v654, %v1180
        %v1190 = vmax.f32 %v1189, %v1030
        %v1191 = vsub.f32 %v1189, %v1030
        %vm1192 = vcmp.ne.f32.partialorder %v1191, %v1191
        %v1193 = vadd.f32 %v1189, %v1030
        %v1194 = vand.u32 2147483647, %v1191
        %v1195 = vsub.f32 0.0, %v1194
        %v1196 = vmul.f32 %v1195, 1.442695
        %v1197 = vpow.pop %v1196
        %v1198 = vadd.f32 %v1197, 1.0
        %v1199 = vlog2.pop %v1198
        %v1200 = vmul.f32 %v1199, 0.6931472
        %v1201 = vmul.f32 -0.5, %v1197
        %v1202 = vadd.f32 %v1201, 1.0
        %v1203 = vmul.f32 %v1202, %v1197
        %v1204 = vand.u32 2147483647, %v1197
        %vm1205 = vcmp.lt.f32.partialorder %v1204, 0.0004427343
        %v1206 = vsel %vm1205, %v1203, %v1200
        %v1207 = vadd.f32 %v1190, %v1206
        %v1208 = vsel %vm1192, %v1193, %v1207
        %v1209 = vsel %vm1187, %v1030, %v1208
        %v1210 = vadd.f32 %v1188, %v1035
        %1211 = vst [vmem:[#allocation2 + $0x28] sm:$0xff] %v1210
        %1212 = vst [vmem:[#allocation3 + $0x28] sm:$0xff] %v1209
        %1213 = vset.pattern.permute.xlu0 6
        %1214 = vperm.xlu0 %1213, %v1038
        %v1215 = vpop.permute.xlu0 %1214
        %vm1216 = vcmp.eq.s32.totalorder %v1215, 1
        %v1217 = vsel %vm1216, %v1188, %v655
        %v1218 = vadd.f32 %v655, %v1209
        %v1219 = vmax.f32 %v1218, %v1031
        %v1220 = vsub.f32 %v1218, %v1031
        %vm1221 = vcmp.ne.f32.partialorder %v1220, %v1220
        %v1222 = vadd.f32 %v1218, %v1031
        %v1223 = vand.u32 2147483647, %v1220
        %v1224 = vsub.f32 0.0, %v1223
        %v1225 = vmul.f32 %v1224, 1.442695
        %v1226 = vpow.pop %v1225
        %v1227 = vadd.f32 %v1226, 1.0
        %v1228 = vlog2.pop %v1227
        %v1229 = vmul.f32 %v1228, 0.6931472
        %v1230 = vmul.f32 -0.5, %v1226
        %v1231 = vadd.f32 %v1230, 1.0
        %v1232 = vmul.f32 %v1231, %v1226
        %v1233 = vand.u32 2147483647, %v1226
        %vm1234 = vcmp.lt.f32.partialorder %v1233, 0.0004427343
        %v1235 = vsel %vm1234, %v1232, %v1229
        %v1236 = vadd.f32 %v1219, %v1235
        %v1237 = vsel %vm1221, %v1222, %v1236
        %v1238 = vsel %vm1216, %v1031, %v1237
        %v1239 = vadd.f32 %v1217, %v1035
        %1240 = vst [vmem:[#allocation2 + $0x30] sm:$0xff] %v1239
        %1241 = vst [vmem:[#allocation3 + $0x30] sm:$0xff] %v1238
        %1242 = vset.pattern.permute.xlu0 7
        %1243 = vperm.xlu0 %1242, %v1038
        %v1244 = vpop.permute.xlu0 %1243
        %vm1245 = vcmp.eq.s32.totalorder %v1244, 1
        %v1246 = vsel %vm1245, %v1217, %v656
        %v1247 = vadd.f32 %v656, %v1238
        %v1248 = vmax.f32 %v1247, %v1032
        %v1249 = vsub.f32 %v1247, %v1032
        %vm1250 = vcmp.ne.f32.partialorder %v1249, %v1249
        %v1251 = vadd.f32 %v1247, %v1032
        %v1252 = vand.u32 2147483647, %v1249
        %v1253 = vsub.f32 0.0, %v1252
        %v1254 = vmul.f32 %v1253, 1.442695
        %v1255 = vpow.pop %v1254
        %v1256 = vadd.f32 %v1255, 1.0
        %v1257 = vlog2.pop %v1256
        %v1258 = vmul.f32 %v1257, 0.6931472
        %v1259 = vmul.f32 -0.5, %v1255
        %v1260 = vadd.f32 %v1259, 1.0
        %v1261 = vmul.f32 %v1260, %v1255
        %v1262 = vand.u32 2147483647, %v1255
        %vm1263 = vcmp.lt.f32.partialorder %v1262, 0.0004427343
        %v1264 = vsel %vm1263, %v1261, %v1258
        %v1265 = vadd.f32 %v1248, %v1264
        %v1266 = vsel %vm1250, %v1251, %v1265
        %v1267 = vsel %vm1245, %v1032, %v1266
        %v1268 = vadd.f32 %v1246, %v1035
        %1269 = vst [vmem:[#allocation2 + $0x38] sm:$0xff] %v1268
        %1270 = vst [vmem:[#allocation3 + $0x38] sm:$0xff] %v1267
        %v1271 = vld [vmem:[#allocation2] sm:$0xff]
        %v1272 = vld [vmem:[#allocation2 + $0x8] sm:$0xff]
        %v1273 = vld [vmem:[#allocation2 + $0x10] sm:$0xff]
        %v1274 = vld [vmem:[#allocation2 + $0x18] sm:$0xff]
        %v1275 = vld [vmem:[#allocation2 + $0x20] sm:$0xff]
        %v1276 = vld [vmem:[#allocation2 + $0x28] sm:$0xff]
        %v1277 = vld [vmem:[#allocation2 + $0x30] sm:$0xff]
        %v1278 = vld [vmem:[#allocation2 + $0x38] sm:$0xff]
        %v1279 = vmul.f32 %v1271, 1.442695
        %v1280 = vpow.pop %v1279
        %v1281 = vmul.f32 %v1272, 1.442695
        %v1282 = vpow.pop %v1281
        %v1283 = vmul.f32 %v1273, 1.442695
        %v1284 = vpow.pop %v1283
        %v1285 = vmul.f32 %v1274, 1.442695
        %v1286 = vpow.pop %v1285
        %v1287 = vmul.f32 %v1275, 1.442695
        %v1288 = vpow.pop %v1287
        %v1289 = vmul.f32 %v1276, 1.442695
        %v1290 = vpow.pop %v1289
        %v1291 = vmul.f32 %v1277, 1.442695
        %v1292 = vpow.pop %v1291
        %v1293 = vmul.f32 %v1278, 1.442695
        %v1294 = vpow.pop %v1293
        %v1295 = vld [vmem:[#allocation3] sm:$0xff]
        %v1296 = vld [vmem:[#allocation3 + $0x8] sm:$0xff]
        %v1297 = vld [vmem:[#allocation3 + $0x10] sm:$0xff]
        %v1298 = vld [vmem:[#allocation3 + $0x18] sm:$0xff]
        %v1299 = vld [vmem:[#allocation3 + $0x20] sm:$0xff]
        %v1300 = vld [vmem:[#allocation3 + $0x28] sm:$0xff]
        %v1301 = vld [vmem:[#allocation3 + $0x30] sm:$0xff]
        %v1302 = vld [vmem:[#allocation3 + $0x38] sm:$0xff]
        %v1303 = vmul.f32 %v1295, 1.442695
        %v1304 = vpow.pop %v1303
        %v1305 = vmul.f32 %v1296, 1.442695
        %v1306 = vpow.pop %v1305
        %v1307 = vmul.f32 %v1297, 1.442695
        %v1308 = vpow.pop %v1307
        %v1309 = vmul.f32 %v1298, 1.442695
        %v1310 = vpow.pop %v1309
        %v1311 = vmul.f32 %v1299, 1.442695
        %v1312 = vpow.pop %v1311
        %v1313 = vmul.f32 %v1300, 1.442695
        %v1314 = vpow.pop %v1313
        %v1315 = vmul.f32 %v1301, 1.442695
        %v1316 = vpow.pop %v1315
        %v1317 = vmul.f32 %v1302, 1.442695
        %v1318 = vpow.pop %v1317
        %v1319 = vadd.f32 %v1280, %v1304
        %v1320 = vadd.f32 %v1282, %v1306
        %v1321 = vadd.f32 %v1284, %v1308
        %v1322 = vadd.f32 %v1286, %v1310
        %v1323 = vadd.f32 %v1288, %v1312
        %v1324 = vadd.f32 %v1290, %v1314
        %v1325 = vadd.f32 %v1292, %v1316
        %v1326 = vadd.f32 %v1294, %v1318
        %v1327 = vld [vmem:[#allocation9] sm:$0xff]
        %v1328 = vld [vmem:[#allocation9 + $0x8] sm:$0xff]
        %v1329 = vld [vmem:[#allocation9 + $0x10] sm:$0xff]
        %v1330 = vld [vmem:[#allocation9 + $0x18] sm:$0xff]
        %v1331 = vld [vmem:[#allocation9 + $0x20] sm:$0xff]
        %v1332 = vld [vmem:[#allocation9 + $0x28] sm:$0xff]
        %v1333 = vld [vmem:[#allocation9 + $0x30] sm:$0xff]
        %v1334 = vld [vmem:[#allocation9 + $0x38] sm:$0xff]
        %v1335 = vld [vmem:[#allocation9 + $0x40] sm:$0xff]
        %v1336 = vld [vmem:[#allocation9 + $0x48] sm:$0xff]
        %v1337 = vld [vmem:[#allocation9 + $0x50] sm:$0xff]
        %v1338 = vld [vmem:[#allocation9 + $0x58] sm:$0xff]
        %v1339 = vld [vmem:[#allocation9 + $0x60] sm:$0xff]
        %v1340 = vld [vmem:[#allocation9 + $0x68] sm:$0xff]
        %v1341 = vld [vmem:[#allocation9 + $0x70] sm:$0xff]
        %v1342 = vld [vmem:[#allocation9 + $0x78] sm:$0xff]
        %1343 = vmatprep.subr.mxu0 0.0
        %1344 = vmatpush1.msra.mxu0 %v1327
        %1345 = vmatprep.subr.mxu0 0.0
        %1346 = vmatpush1.msra.mxu0 %v1328
        %1347 = vmatprep.subr.mxu0 0.0
        %1348 = vmatpush1.msra.mxu0 %v1329
        %1349 = vmatprep.subr.mxu0 0.0
        %1350 = vmatpush1.msra.mxu0 %v1330
        %1351 = vmatprep.subr.mxu0 0.0
        %1352 = vmatpush1.msra.mxu0 %v1331
        %1353 = vmatprep.subr.mxu0 0.0
        %1354 = vmatpush1.msra.mxu0 %v1332
        %1355 = vmatprep.subr.mxu0 0.0
        %1356 = vmatpush1.msra.mxu0 %v1333
        %1357 = vmatprep.subr.mxu0 0.0
        %1358 = vmatpush1.msra.mxu0 %v1334
        %1359 = vmatprep.subr.mxu0 0.0
        %1360 = vmatpush1.msra.mxu0 %v1335
        %1361 = vmatprep.subr.mxu0 0.0
        %1362 = vmatpush1.msra.mxu0 %v1336
        %1363 = vmatprep.subr.mxu0 0.0
        %1364 = vmatpush1.msra.mxu0 %v1337
        %1365 = vmatprep.subr.mxu0 0.0
        %1366 = vmatpush1.msra.mxu0 %v1338
        %1367 = vmatprep.subr.mxu0 0.0
        %1368 = vmatpush1.msra.mxu0 %v1339
        %1369 = vmatprep.subr.mxu0 0.0
        %1370 = vmatpush1.msra.mxu0 %v1340
        %1371 = vmatprep.subr.mxu0 0.0
        %1372 = vmatpush1.msra.mxu0 %v1341
        %1373 = vmatprep.subr.mxu0 0.0
        %1374 = vmatpush1.msra.mxu0 %v1342
        %1375 = vmatprep.subr.mxu0 0.0
        %1376 = vmatpush1.msra.mxu0 0.0
        %1377 = vmatprep.subr.mxu0 0.0
        %1378 = vmatpush1.msra.mxu0 0.0
        %1379 = vmatprep.subr.mxu0 0.0
        %1380 = vmatpush1.msra.mxu0 0.0
        %1381 = vmatprep.subr.mxu0 0.0
        %1382 = vmatpush1.msra.mxu0 0.0
        %1383 = vmatprep.subr.mxu0 0.0
        %1384 = vmatpush1.msra.mxu0 0.0
        %1385 = vmatprep.subr.mxu0 0.0
        %1386 = vmatpush1.msra.mxu0 0.0
        %1387 = vmatprep.subr.mxu0 0.0
        %1388 = vmatpush1.msra.mxu0 0.0
        %1389 = vmatprep.subr.mxu0 0.0
        %1390 = vmatpush1.msra.mxu0 0.0
        %1391 = vmatprep.subr.mxu0 0.0
        %1392 = vmatpush1.msra.mxu0 0.0
        %1393 = vmatprep.subr.mxu0 0.0
        %1394 = vmatpush1.msra.mxu0 0.0
        %1395 = vmatprep.subr.mxu0 0.0
        %1396 = vmatpush1.msra.mxu0 0.0
        %1397 = vmatprep.subr.mxu0 0.0
        %1398 = vmatpush1.msra.mxu0 0.0
        %1399 = vmatprep.subr.mxu0 0.0
        %1400 = vmatpush1.msra.mxu0 0.0
        %1401 = vmatprep.subr.mxu0 0.0
        %1402 = vmatpush1.msra.mxu0 0.0
        %1403 = vmatprep.subr.mxu0 0.0
        %1404 = vmatpush1.msra.mxu0 0.0
        %1405 = vmatprep.subr.mxu0 0.0
        %1406 = vmatpush1.msra.mxu0 0.0
        %1407 = vmatprep.mubr.f32.mxu0 0.0
        %1408 = vmatmul.mubr.f32.gmra.mrb[0].mxu0 %v1319
        %v1409 = vpop.f32.mrb[0].mxu0
        %v1410 = vadd.f32 0.0, %v1409
        %v1411 = vpop.f32.mrb[0].mxu0
        %1412 = vmatprep.mubr.f32.mxu0 0.0
        %1413 = vmatmul.mubr.f32.gmra.mrb[0].mxu0 %v1320
        %v1414 = vpop.f32.mrb[0].mxu0
        %v1415 = vadd.f32 0.0, %v1414
        %v1416 = vpop.f32.mrb[0].mxu0
        %1417 = vmatprep.mubr.f32.mxu0 0.0
        %1418 = vmatmul.mubr.f32.gmra.mrb[0].mxu0 %v1321
        %v1419 = vpop.f32.mrb[0].mxu0
        %v1420 = vadd.f32 0.0, %v1419
        %v1421 = vpop.f32.mrb[0].mxu0
        %1422 = vmatprep.mubr.f32.mxu0 0.0
        %1423 = vmatmul.mubr.f32.gmra.mrb[0].mxu0 %v1322
        %v1424 = vpop.f32.mrb[0].mxu0
        %v1425 = vadd.f32 0.0, %v1424
        %v1426 = vpop.f32.mrb[0].mxu0
        %1427 = vmatprep.mubr.f32.mxu0 0.0
        %1428 = vmatmul.mubr.f32.gmra.mrb[0].mxu0 %v1323
        %v1429 = vpop.f32.mrb[0].mxu0
        %v1430 = vadd.f32 0.0, %v1429
        %v1431 = vpop.f32.mrb[0].mxu0
        %1432 = vmatprep.mubr.f32.mxu0 0.0
        %1433 = vmatmul.mubr.f32.gmra.mrb[0].mxu0 %v1324
        %v1434 = vpop.f32.mrb[0].mxu0
        %v1435 = vadd.f32 0.0, %v1434
        %v1436 = vpop.f32.mrb[0].mxu0
        %1437 = vmatprep.mubr.f32.mxu0 0.0
        %1438 = vmatmul.mubr.f32.gmra.mrb[0].mxu0 %v1325
        %v1439 = vpop.f32.mrb[0].mxu0
        %v1440 = vadd.f32 0.0, %v1439
        %v1441 = vpop.f32.mrb[0].mxu0
        %1442 = vmatprep.mubr.f32.mxu0 0.0
        %1443 = vmatmul.mubr.f32.gmra.mrb[0].mxu0 %v1326
        %v1444 = vpop.f32.mrb[0].mxu0
        %v1445 = vadd.f32 0.0, %v1444
        %v1446 = vpop.f32.mrb[0].mxu0
        %1447 = vdwg.mxu0
        %1448 = vst [vmem:[%s327] sm:$0xff] %v1410
        %1449 = vst [vmem:[%s327 + $0x8] sm:$0xff] %v1415
        %1450 = vst [vmem:[%s327 + $0x10] sm:$0xff] %v1420
        %1451 = vst [vmem:[%s327 + $0x18] sm:$0xff] %v1425
        %1452 = vst [vmem:[%s327 + $0x20] sm:$0xff] %v1430
        %1453 = vst [vmem:[%s327 + $0x28] sm:$0xff] %v1435
        %1454 = vst [vmem:[%s327 + $0x30] sm:$0xff] %v1440
        %1455 = vst [vmem:[%s327 + $0x38] sm:$0xff] %v1445
        %1456 = vst [vmem:[%s334] sm:$0xff] %v1326
        %s1457 = sand.u32 %s156, 1
        %s1458 = scalar_lea.sflag [#allocation6], %s1457
        %s1459 = sand.u32 %s156, 1
        %s1460 = smul.addr %s1459, 64
        %s1461 = scalar_lea.vmem [#allocation10], %s1460
        %s1462 = sand.u32 %s182, 1
        %s1463 = scalar_lea.sflag [#allocation12], %s1462
        %s1464 = sand.u32 %s182, 1
        %s1465 = smul.addr %s1464, 8
        %s1466 = scalar_lea.vmem [#allocation11], %s1465
        // Predicated region
        $region53: #{tpu_custom_call.1} parent=39 // pred_check
          %p1467 = pneg %p166
        $region54: #{tpu_custom_call.1} parent=39 // pred_check_branch
          %1469 = sbr.rel (%p1467) target = $region56
        $region55: #{tpu_custom_call.1} parent=39 // pred_region
          %s1471 = ssub.s32 1024, 1024
          %1472 = vsyncadd %s1458, %s1471
          %s1473 = smul.addr %s28, 128
          %s1474 = scalar_lea.hbm %s5, %s1473
          %s1475 = sshll.u32 %s1461, 4
          %s1476 = int_to_ptr.vmem [resolvable:$true] %s1475
          %1481 = dma.vmem_to_hbm [thread:$0]  %s1476, 1024, %s1474, %s1458, 128, 256, 8
        $region56: #{tpu_custom_call.1} parent=39 // pred_fallthru
          _
        // Predicated region
        $region57: #{tpu_custom_call.1} parent=39 // pred_check
          %p1482 = pneg %p192
        $region58: #{tpu_custom_call.1} parent=39 // pred_check_branch
          %1484 = sbr.rel (%p1482) target = $region60
        $region59: #{tpu_custom_call.1} parent=39 // pred_region
          %s1486 = ssub.s32 128, 128
          %1487 = vsyncadd %s1463, %s1486
          %s1488 = smul.addr %s28, 128
          %s1489 = scalar_lea.hbm %s6, %s1488
          %s1491 = sshll.u32 %s1466, 4
          %s1492 = int_to_ptr.vmem [resolvable:$true] %s1491
          %1494 = dma.vmem_to_hbm [thread:$0]  %s1492, 128, %s1489, %s1463
        $region60: #{tpu_custom_call.1} parent=39 // pred_fallthru
          _
      $region40: #{tpu_custom_call.1} parent=5 // pred_fallthru
        _
      %p1495 = scmp.le.s32.totalorder 2, %s23
      // Predicated region
      $region61: #{tpu_custom_call.1} parent=5 // pred_check
        %p1496 = pneg %p1495
      $region62: #{tpu_custom_call.1} parent=5 // pred_check_branch
        %1498 = sbr.rel (%p1496) target = $region64
      $region63: #{tpu_custom_call.1} parent=5 // pred_region
        %s1499 = ssub.s32 %s23, 2
        // Predicated region
        $region65: #{tpu_custom_call.1} parent=63 // pred_check
          %p1500 = pneg %p172
        $region66: #{tpu_custom_call.1} parent=63 // pred_check_branch
          %1502 = sbr.rel (%p1500) target = $region68
        $region67: #{tpu_custom_call.1} parent=63 // pred_region
          %s1503 = sand.u32 %s157, 1
          %s1504 = scalar_lea.sflag [#allocation6], %s1503
          %s1505 = sand.u32 %s157, 1
          %s1506 = smul.addr %s1505, 64
          %s1507 = scalar_lea.vmem [#allocation10], %s1506
          %1508 = dma.done %s1504, 1024
        $region68: #{tpu_custom_call.1} parent=63 // pred_fallthru
          _
        // Predicated region
        $region69: #{tpu_custom_call.1} parent=63 // pred_check
          %p1509 = pneg %p198
        $region70: #{tpu_custom_call.1} parent=63 // pred_check_branch
          %1511 = sbr.rel (%p1509) target = $region72
        $region71: #{tpu_custom_call.1} parent=63 // pred_region
          %s1512 = sand.u32 %s183, 1
          %s1513 = scalar_lea.sflag [#allocation12], %s1512
          %s1514 = sand.u32 %s183, 1
          %s1515 = smul.addr %s1514, 8
          %s1516 = scalar_lea.vmem [#allocation11], %s1515
          %1517 = dma.done %s1513, 128
        $region72: #{tpu_custom_call.1} parent=63 // pred_fallthru
          _
      $region64: #{tpu_custom_call.1} parent=5 // pred_fallthru
        _
    $region6: #{tpu_custom_call.1} parent=1 // loop_footer
      %s27 = sadd.s32 1, %s23
    $region7: #{tpu_custom_call.1} parent=1 // loop_footer_branch
      %22 = sbr.rel target = $region3
    $region8: #{tpu_custom_call.1} parent=1 // loop_exit
      _
    %1518 = vsyncpa [#allocation5], 1
    %s1519 = scalar_lea.sflag [#allocation5], 1
    %1520 = vsyncpa %s1519, 1
    %1521 = vsyncpa [#allocation8], 1
    %1522 = vsyncpa [#allocation6], 1
    %s1523 = scalar_lea.sflag [#allocation6], 1
    %1524 = vsyncpa %s1523, 1
    %1525 = vsyncpa [#allocation12], 1
    %s1526 = scalar_lea.sflag [#allocation12], 1
    %1527 = vsyncpa %s1526, 1

</llo_original>
